<compile_context>
chip_gen: v7x
topology: tpu7x:2x2x1
jax: 0.10.0
libtpu: 0.0.40
codegen_flags: <defaults>
</compile_context>

<pallas_src>
import math
from functools import partial

import jax
import jax.numpy as jnp
from jax.experimental import pallas as pl
from jax.experimental.pallas import tpu as pltpu


def _tc_block_kernel(*refs, block_meta, L, MP, F, C_total, persistent_halo):
    """Fused TCBlock: all DenseBlocks for one batch element, VMEM-resident.

    refs = (x_ref, w_0, b_0, ..., w_{n-1}, b_{n-1}, out_ref, act_ref)
      x_ref   : (1, L, C0)            input activations
      w_i     : (2, C_i, 2F)          stacked [gate | filter] conv taps
      b_i     : (1, 2F)               stacked biases (f32)
      out_ref : (1, L, C_total)       input channels + all new channels
      act_ref : (L + 2*MP, C_total)   VMEM scratch (MP zero halo rows each side)
    block_meta[i] = (C_i, pad_i) with pad_i = dilation_i // 2.
    """
    n = len(block_meta)
    x_ref = refs[0]
    wb_refs = refs[1:1 + 2 * n]
    out_ref = refs[1 + 2 * n]
    act_ref = refs[2 + 2 * n]

    c0 = block_meta[0][0]

    def _zero_halo():
        # Out-of-range taps read these zeros -> Conv1d's symmetric zero padding
        # (pad = dilation // 2) for every dilation at once.
        zeros = jnp.zeros((MP, C_total), dtype=act_ref.dtype)
        act_ref[pl.ds(0, MP), :] = zeros
        act_ref[pl.ds(MP + L, MP), :] = zeros

    if persistent_halo:
        # Halo rows are never written by staging/gating stores, so zeroing them
        # once persists across the (sequential, "arbitrary") batch axis.
        pl.when(pl.program_id(0) == 0)(_zero_halo)
    else:
        _zero_halo()

    # Stage the input channels into the centre of the scratch and straight
    # into the output block (no end-of-step slab copy).
    x0 = x_ref[0]
    act_ref[pl.ds(MP, L), pl.ds(0, c0)] = x0.astype(act_ref.dtype)
    out_ref[0, :, pl.ds(0, c0)] = x0.astype(out_ref.dtype)

    # Statically-unrolled chain of DenseBlocks, all staying in VMEM.
    for i, (ci, pad) in enumerate(block_meta):
        w_ref = wb_refs[2 * i]       # (2, ci, 2F)   [gate | filter]
        b_ref = wb_refs[2 * i + 1]   # (1, 2F)

        # Dilated k=2 taps: x[t - d/2] and x[t + d/2], sliced off the Ref.
        x_prev = act_ref[pl.ds(MP - pad, L), pl.ds(0, ci)]
        x_next = act_ref[pl.ds(MP + pad, L), pl.ds(0, ci)]

        # One fused (L, ci) @ (ci, 2F) matmul per tap; accumulate in f32.
        xgf = (jnp.dot(x_prev, w_ref[0], preferred_element_type=jnp.float32)
               + jnp.dot(x_next, w_ref[1], preferred_element_type=jnp.float32)
               + b_ref[...].astype(jnp.float32))

        # Gating in f32 (v5e VPU/EUP have no bf16): tanh(xf) * sigmoid(xg).
        gated = jnp.tanh(xgf[:, F:2 * F]) * jax.nn.sigmoid(xgf[:, 0:F])

        if i + 1 < n:   # last block's channels are only needed in the output
            act_ref[pl.ds(MP, L), pl.ds(ci, F)] = gated.astype(act_ref.dtype)
        out_ref[0, :, pl.ds(ci, F)] = gated.astype(out_ref.dtype)


def _vmem_capacity_bytes():
    """Per-core VMEM capacity; conservative 64 MiB (v7x) if the query fails."""
    try:
        cap = int(pltpu.get_tpu_info().vmem_capacity_bytes)
        if cap > 0:
            return cap
    except Exception:
        pass
    return 64 * 2 ** 20


def tc_block_forward(x, fused_params, *, out_dtype=None, persistent_halo=True):
    """Run the fused TCBlock.

    fused_params[i] = (dilation, w (2, C_i, 2F), b (1, 2F)); the weight dtype
    selects the matmul / activation-scratch dtype (f32 or bf16).
    persistent_halo=True : zero halos once, batch axis "arbitrary" (sequential).
    persistent_halo=False: zero halos every step, batch axis "parallel"
                           (lets megacore parts split the batch across TCs).
    """
    if not fused_params:
        return x
    B, L, C0 = x.shape
    if out_dtype is None:
        out_dtype = x.dtype

    F = fused_params[0][1].shape[-1] // 2
    n = len(fused_params)
    C_total = C0 + n * F
    max_d = max(d for d, _, _ in fused_params)
    if max_d % 2 != 0:
        raise ValueError("dilations must be even (TCBlock uses 2**i, i>=1)")
    MP = ((max_d // 2 + 7) // 8) * 8          # halo rows, sublane-aligned

    block_meta = tuple((C0 + i * F, d // 2)
                       for i, (d, _, _) in enumerate(fused_params))
    act_dtype = fused_params[0][1].dtype      # scratch matches matmul operands

    inputs = [x]
    for (_, w, bia) in fused_params:
        inputs.append(w)
        inputs.append(bia)

    # ---- VMEM budget (generation-aware) -----------------------------------
    x_isz = jnp.dtype(x.dtype).itemsize
    act_isz = jnp.dtype(act_dtype).itemsize
    out_isz = jnp.dtype(out_dtype).itemsize
    act_bytes = (L + 2 * MP) * C_total * act_isz
    io_bytes = 2 * L * C0 * x_isz + 2 * L * C_total * out_isz
    w_bytes = sum(2 * (w.size * jnp.dtype(w.dtype).itemsize
                       + bia.size * jnp.dtype(bia.dtype).itemsize)
                  for _, w, bia in fused_params)     # conservative (2x buffered)
    est = act_bytes + io_bytes + w_bytes + (4 << 20)  # + compiler scratch headroom
    cap = int(0.85 * _vmem_capacity_bytes())          # ~56 MiB v7x, ~109 MiB v5e/v6e
    vmem_limit = int(min(cap, max(est, 32 * 2 ** 20)))

    # ---- Advisory cost estimate (lets XLA overlap neighbours) -------------
    sum_ci = sum(ci for ci, _ in block_meta)
    cost = pl.CostEstimate(
        flops=int(8 * B * L * F * sum_ci),            # 2 taps * 2*M*N*K
        transcendentals=int(2 * B * L * F * n),       # tanh + sigmoid
        bytes_accessed=int(x.size * x_isz + B * L * C_total * out_isz
                           + sum(w.size * jnp.dtype(w.dtype).itemsize
                                 + bia.size * jnp.dtype(bia.dtype).itemsize
                                 for _, w, bia in fused_params)))

    kernel = partial(_tc_block_kernel, block_meta=block_meta, L=L, MP=MP,
                     F=F, C_total=C_total, persistent_halo=persistent_halo)
    dim_sem = ("arbitrary",) if persistent_halo else ("parallel",)

    def call(weight_pipeline_mode):
        in_specs = [pl.BlockSpec((1, L, C0), lambda b: (b, 0, 0))]
        for (_, w, bia) in fused_params:
            if weight_pipeline_mode is None:
                in_specs.append(pl.BlockSpec(w.shape, lambda b: (0, 0, 0)))
                in_specs.append(pl.BlockSpec(bia.shape, lambda b: (0, 0)))
            else:
                in_specs.append(pl.BlockSpec(w.shape, lambda b: (0, 0, 0),
                                             pipeline_mode=weight_pipeline_mode))
                in_specs.append(pl.BlockSpec(bia.shape, lambda b: (0, 0),
                                             pipeline_mode=weight_pipeline_mode))
        return pl.pallas_call(
            kernel,
            out_shape=jax.ShapeDtypeStruct((B, L, C_total), out_dtype),
            grid_spec=pltpu.PrefetchScalarGridSpec(
                num_scalar_prefetch=0,
                grid=(B,),
                in_specs=in_specs,
                out_specs=pl.BlockSpec((1, L, C_total), lambda b: (b, 0, 0)),
                scratch_shapes=[pltpu.VMEM((L + 2 * MP, C_total), act_dtype)],
            ),
            compiler_params=pltpu.CompilerParams(
                dimension_semantics=dim_sem,
                vmem_limit_bytes=vmem_limit,
            ),
            cost_estimate=cost,
        )(*inputs)

    try:
        # Constant index_map -> single-buffer the weights/biases (saves one
        # full copy of all weights in VMEM).
        return call(pl.Buffered(1))
    except Exception:
        # Fallback for jax/Mosaic versions that reject Buffered(1) here.
        return call(None)


# --------------------------- parameter handling ----------------------------
def init_tc_block_params(key, in_channel, L, filters):
    """Per-block f32 parameters, PyTorch Conv1d-style uniform init.

    Returns (params, output_dim); params[i] = (dilation, wg, wf, bg, bf) with
    wg/wf of shape (2, C_i, F) (tap, in_channel, out_channel) and bg/bf (1, F).
    """
    params = []
    c = in_channel
    n = int(math.ceil(math.log2(L)))
    for i in range(1, n):
        d = 2 ** i
        key, k1, k2, k3, k4 = jax.random.split(key, 5)
        bound = 1.0 / math.sqrt(c * 2)          # fan_in = in_channel * kernel_size
        wg = jax.random.uniform(k1, (2, c, filters), jnp.float32, -bound, bound)
        wf = jax.random.uniform(k2, (2, c, filters), jnp.float32, -bound, bound)
        bg = jax.random.uniform(k3, (1, filters), jnp.float32, -bound, bound)
        bf = jax.random.uniform(k4, (1, filters), jnp.float32, -bound, bound)
        params.append((d, wg, wf, bg, bf))
        c += filters
    return params, c


def prepare_fused_params(params, compute_dtype=jnp.float32):
    """Stack gate+filter weights into (2, C_i, 2F) in the matmul dtype."""
    fused = []
    for (d, wg, wf, bg, bf) in params:
        w = jnp.concatenate([wg, wf], axis=-1).astype(compute_dtype)
        b = jnp.concatenate([bg, bf], axis=-1).astype(jnp.float32)
        fused.append((d, w, b))
    return fused


# ---------------- pure-JAX reference (for correctness check) ----------------
def _dense_block_ref(x, wg, wf, bg, bf, d):
    B, L, C = x.shape
    pad = d // 2
    xp = jnp.pad(x, ((0, 0), (pad, pad), (0, 0)))
    x_prev, x_next = xp[:, 0:L], xp[:, d:d + L]
    xg = (jnp.einsum("blc,cf->blf", x_prev, wg[0])
          + jnp.einsum("blc,cf->blf", x_next, wg[1]) + bg[0])
    xf = (jnp.einsum("blc,cf->blf", x_prev, wf[0])
          + jnp.einsum("blc,cf->blf", x_next, wf[1]) + bf[0])
    return jnp.concatenate([x, jnp.tanh(xf) * jax.nn.sigmoid(xg)], axis=-1)


def tc_block_ref(x, params):
    for (d, wg, wf, bg, bf) in params:
        x = _dense_block_ref(x, wg, wf, bg, bf, d)
    return x


if __name__ == "__main__":
    B, L, C, F = 2, 16, 4, 8            # batch, seq length, in_channel, filters
    key = jax.random.PRNGKey(0)
    kx, kp = jax.random.split(key)
    x = jax.random.normal(kx, (B, L, C), dtype=jnp.float32)

    params, out_dim = init_tc_block_params(kp, C, L, F)  # ceil(log2(16))-1 = 3 blocks
    y_ref = tc_block_ref(x, params)

    # f32 matmul path (exactness check vs. the pure-JAX reference).
    y = jax.block_until_ready(
        tc_block_forward(x, prepare_fused_params(params, jnp.float32)))
    assert y.shape == (B, L, out_dim), (y.shape, out_dim)
    assert jnp.allclose(y, y_ref, atol=1e-5), float(jnp.max(jnp.abs(y - y_ref)))

    # bf16 weights + bf16 scratch + bf16 output (v6e/v7x production path;
    # bf16 MXU operands are also the right choice on v5e).
    y16 = jax.block_until_ready(
        tc_block_forward(x, prepare_fused_params(params, jnp.bfloat16),
                         out_dtype=jnp.bfloat16))
    assert y16.dtype == jnp.bfloat16
    err = float(jnp.max(jnp.abs(y16.astype(jnp.float32) - y_ref)))
    assert err < 1e-1, err

    # Per-step halo zeroing + "parallel" batch axis (megacore batch split mode).
    y_par = jax.block_until_ready(
        tc_block_forward(x, prepare_fused_params(params, jnp.float32),
                         persistent_halo=False))
    assert jnp.allclose(y_par, y_ref, atol=1e-5)

    print("KERNEL_OK")
</pallas_src>

<mosaic_0001>
module attributes {stable_mosaic.version = 11 : i64} {
  func.func @_tc_block_kernel(%arg0: i32, %arg1: memref<1x16x4xf32, #tpu.memory_space<vmem>>, %arg2: memref<2x4x16xf32, #tpu.memory_space<vmem>>, %arg3: memref<1x16xf32, #tpu.memory_space<vmem>>, %arg4: memref<2x12x16xf32, #tpu.memory_space<vmem>>, %arg5: memref<1x16xf32, #tpu.memory_space<vmem>>, %arg6: memref<2x20x16xf32, #tpu.memory_space<vmem>>, %arg7: memref<1x16xf32, #tpu.memory_space<vmem>>, %arg8: memref<1x16x28xf32, #tpu.memory_space<vmem>>, %arg9: memref<32x28xf32, #tpu.memory_space<vmem>>) attributes {dimension_semantics = [#tpu.dimension_semantics<arbitrary>], iteration_bounds = array<i64: 2>, scalar_prefetch = 0 : i64, scratch_operands = 1 : i64, tpu.core_type = #tpu.core_type<tc>, window_params = [{transform_indices = @transform_0, window_bounds = array<i64: 1, 16, 4>}, {pipeline_mode = #tpu.pipeline_mode<synchronous>, transform_indices = @transform_1, window_bounds = array<i64: 2, 4, 16>}, {pipeline_mode = #tpu.pipeline_mode<synchronous>, transform_indices = @transform_2, window_bounds = array<i64: 1, 16>}, {pipeline_mode = #tpu.pipeline_mode<synchronous>, transform_indices = @transform_3, window_bounds = array<i64: 2, 12, 16>}, {pipeline_mode = #tpu.pipeline_mode<synchronous>, transform_indices = @transform_4, window_bounds = array<i64: 1, 16>}, {pipeline_mode = #tpu.pipeline_mode<synchronous>, transform_indices = @transform_5, window_bounds = array<i64: 2, 20, 16>}, {pipeline_mode = #tpu.pipeline_mode<synchronous>, transform_indices = @transform_6, window_bounds = array<i64: 1, 16>}, {transform_indices = @transform_7, window_bounds = array<i64: 1, 16, 28>}]} {
    %c0_i32 = arith.constant 0 : i32
    %0 = arith.cmpi eq, %arg0, %c0_i32 : i32
    %1 = arith.extui %0 : i1 to i32
    %c0_i32_0 = arith.constant 0 : i32
    %2 = arith.cmpi ne, %1, %c0_i32_0 : i32
    scf.if %2 {
      %cst_56 = arith.constant 0.000000e+00 : f32
      %83 = vector.broadcast %cst_56 : f32 to vector<8x28xf32>
      %c0_57 = arith.constant 0 : index
      %c0_58 = arith.constant 0 : index
      %84 = vector.load %arg9[%c0_57, %c0_58] : memref<32x28xf32, #tpu.memory_space<vmem>>, vector<8x28xf32>
      tpu.vector_store %arg9[%c0_57, %c0_58], %83 {strides = array<i32>} : memref<32x28xf32, #tpu.memory_space<vmem>>, vector<8x28xf32>,
      %c24 = arith.constant 24 : index
      %c0_59 = arith.constant 0 : index
      %85 = vector.load %arg9[%c24, %c0_59] : memref<32x28xf32, #tpu.memory_space<vmem>>, vector<8x28xf32>
      tpu.vector_store %arg9[%c24, %c0_59], %83 {strides = array<i32>} : memref<32x28xf32, #tpu.memory_space<vmem>>, vector<8x28xf32>,
    } else {
    }
    %c0 = arith.constant 0 : index
    %c0_1 = arith.constant 0 : index
    %c0_2 = arith.constant 0 : index
    %3 = vector.load %arg1[%c0, %c0_1, %c0_2] : memref<1x16x4xf32, #tpu.memory_space<vmem>>, vector<1x16x4xf32>
    %4 = vector.shape_cast %3 : vector<1x16x4xf32> to vector<16x4xf32>
    %c8 = arith.constant 8 : index
    %c0_3 = arith.constant 0 : index
    %5 = vector.load %arg9[%c8, %c0_3] : memref<32x28xf32, #tpu.memory_space<vmem>>, vector<16x4xf32>
    tpu.vector_store %arg9[%c8, %c0_3], %4 {strides = array<i32>} : memref<32x28xf32, #tpu.memory_space<vmem>>, vector<16x4xf32>,
    %c0_4 = arith.constant 0 : index
    %c0_5 = arith.constant 0 : index
    %c0_6 = arith.constant 0 : index
    %6 = vector.load %arg8[%c0_4, %c0_5, %c0_6] : memref<1x16x28xf32, #tpu.memory_space<vmem>>, vector<1x16x4xf32>
    %7 = vector.shape_cast %6 : vector<1x16x4xf32> to vector<16x4xf32>
    %8 = vector.shape_cast %4 : vector<16x4xf32> to vector<1x16x4xf32>
    tpu.vector_store %arg8[%c0_4, %c0_5, %c0_6], %8 {strides = array<i32>} : memref<1x16x28xf32, #tpu.memory_space<vmem>>, vector<1x16x4xf32>,
    %c7 = arith.constant 7 : index
    %c0_7 = arith.constant 0 : index
    %9 = vector.load %arg9[%c7, %c0_7] : memref<32x28xf32, #tpu.memory_space<vmem>>, vector<16x4xf32>
    %c9 = arith.constant 9 : index
    %c0_8 = arith.constant 0 : index
    %10 = vector.load %arg9[%c9, %c0_8] : memref<32x28xf32, #tpu.memory_space<vmem>>, vector<16x4xf32>
    %c0_9 = arith.constant 0 : index
    %c0_10 = arith.constant 0 : index
    %c0_11 = arith.constant 0 : index
    %11 = vector.load %arg2[%c0_9, %c0_10, %c0_11] : memref<2x4x16xf32, #tpu.memory_space<vmem>>, vector<1x4x16xf32>
    %12 = vector.shape_cast %11 : vector<1x4x16xf32> to vector<4x16xf32>
    %cst = arith.constant dense<0.000000e+00> : vector<16x16xf32>
    %13 = tpu.matmul %9, %12, %cst {dimension_numbers = #tpu.dot_dimension_numbers<[1], [0], [0], [1], [0, 0, 1, 1], [], []>} : vector<16x4xf32>, vector<4x16xf32>, vector<16x16xf32> -> vector<16x16xf32>
    %c1 = arith.constant 1 : index
    %c0_12 = arith.constant 0 : index
    %c0_13 = arith.constant 0 : index
    %14 = vector.load %arg2[%c1, %c0_12, %c0_13] : memref<2x4x16xf32, #tpu.memory_space<vmem>>, vector<1x4x16xf32>
    %15 = vector.shape_cast %14 : vector<1x4x16xf32> to vector<4x16xf32>
    %cst_14 = arith.constant dense<0.000000e+00> : vector<16x16xf32>
    %16 = tpu.matmul %10, %15, %cst_14 {dimension_numbers = #tpu.dot_dimension_numbers<[1], [0], [0], [1], [0, 0, 1, 1], [], []>} : vector<16x4xf32>, vector<4x16xf32>, vector<16x16xf32> -> vector<16x16xf32>
    %17 = arith.addf %13, %16 : vector<16x16xf32>
    %c0_15 = arith.constant 0 : index
    %c0_16 = arith.constant 0 : index
    %18 = vector.load %arg3[%c0_15, %c0_16] : memref<1x16xf32, #tpu.memory_space<vmem>>, vector<1x16xf32>
    %19 = vector.broadcast %18 : vector<1x16xf32> to vector<16x16xf32>
    %20 = arith.addf %17, %19 : vector<16x16xf32>
    %21 = vector.extract_strided_slice %20 {offsets = [0, 8], sizes = [16, 8], strides = [1, 1]} : vector<16x16xf32> to vector<16x8xf32>
    %22 = math.tanh %21 : vector<16x8xf32>
    %23 = vector.extract_strided_slice %20 {offsets = [0, 0], sizes = [16, 8], strides = [1, 1]} : vector<16x16xf32> to vector<16x8xf32>
    %24 = arith.negf %23 : vector<16x8xf32>
    %25 = math.exp %24 : vector<16x8xf32>
    %cst_17 = arith.constant 1.000000e+00 : f32
    %26 = vector.broadcast %cst_17 : f32 to vector<16x8xf32>
    %27 = arith.addf %26, %25 : vector<16x8xf32>
    %28 = arith.divf %26, %27 : vector<16x8xf32>
    %29 = arith.mulf %22, %28 : vector<16x8xf32>
    %c8_18 = arith.constant 8 : index
    %c4 = arith.constant 4 : index
    %30 = vector.load %arg9[%c8_18, %c4] : memref<32x28xf32, #tpu.memory_space<vmem>>, vector<16x8xf32>
    tpu.vector_store %arg9[%c8_18, %c4], %29 {strides = array<i32>} : memref<32x28xf32, #tpu.memory_space<vmem>>, vector<16x8xf32>,
    %c0_19 = arith.constant 0 : index
    %c0_20 = arith.constant 0 : index
    %c4_21 = arith.constant 4 : index
    %31 = vector.load %arg8[%c0_19, %c0_20, %c4_21] : memref<1x16x28xf32, #tpu.memory_space<vmem>>, vector<1x16x8xf32>
    %32 = vector.shape_cast %31 : vector<1x16x8xf32> to vector<16x8xf32>
    %33 = vector.shape_cast %29 : vector<16x8xf32> to vector<1x16x8xf32>
    tpu.vector_store %arg8[%c0_19, %c0_20, %c4_21], %33 {strides = array<i32>} : memref<1x16x28xf32, #tpu.memory_space<vmem>>, vector<1x16x8xf32>,
    %c6 = arith.constant 6 : index
    %c0_22 = arith.constant 0 : index
    %34 = vector.load %arg9[%c6, %c0_22] : memref<32x28xf32, #tpu.memory_space<vmem>>, vector<16x12xf32>
    %c10 = arith.constant 10 : index
    %c0_23 = arith.constant 0 : index
    %35 = vector.load %arg9[%c10, %c0_23] : memref<32x28xf32, #tpu.memory_space<vmem>>, vector<16x12xf32>
    %c0_24 = arith.constant 0 : index
    %c0_25 = arith.constant 0 : index
    %c0_26 = arith.constant 0 : index
    %36 = vector.load %arg4[%c0_24, %c0_25, %c0_26] : memref<2x12x16xf32, #tpu.memory_space<vmem>>, vector<1x12x16xf32>
    %37 = vector.shape_cast %36 : vector<1x12x16xf32> to vector<12x16xf32>
    %cst_27 = arith.constant dense<0.000000e+00> : vector<16x16xf32>
    %38 = tpu.matmul %34, %37, %cst_27 {dimension_numbers = #tpu.dot_dimension_numbers<[1], [0], [0], [1], [0, 0, 1, 1], [], []>} : vector<16x12xf32>, vector<12x16xf32>, vector<16x16xf32> -> vector<16x16xf32>
    %c1_28 = arith.constant 1 : index
    %c0_29 = arith.constant 0 : index
    %c0_30 = arith.constant 0 : index
    %39 = vector.load %arg4[%c1_28, %c0_29, %c0_30] : memref<2x12x16xf32, #tpu.memory_space<vmem>>, vector<1x12x16xf32>
    %40 = vector.shape_cast %39 : vector<1x12x16xf32> to vector<12x16xf32>
    %cst_31 = arith.constant dense<0.000000e+00> : vector<16x16xf32>
    %41 = tpu.matmul %35, %40, %cst_31 {dimension_numbers = #tpu.dot_dimension_numbers<[1], [0], [0], [1], [0, 0, 1, 1], [], []>} : vector<16x12xf32>, vector<12x16xf32>, vector<16x16xf32> -> vector<16x16xf32>
    %42 = arith.addf %38, %41 : vector<16x16xf32>
    %c0_32 = arith.constant 0 : index
    %c0_33 = arith.constant 0 : index
    %43 = vector.load %arg5[%c0_32, %c0_33] : memref<1x16xf32, #tpu.memory_space<vmem>>, vector<1x16xf32>
    %44 = vector.broadcast %43 : vector<1x16xf32> to vector<16x16xf32>
    %45 = arith.addf %42, %44 : vector<16x16xf32>
    %46 = vector.extract_strided_slice %45 {offsets = [0, 8], sizes = [16, 8], strides = [1, 1]} : vector<16x16xf32> to vector<16x8xf32>
    %47 = math.tanh %46 : vector<16x8xf32>
    %48 = vector.extract_strided_slice %45 {offsets = [0, 0], sizes = [16, 8], strides = [1, 1]} : vector<16x16xf32> to vector<16x8xf32>
    %49 = arith.negf %48 : vector<16x8xf32>
    %50 = math.exp %49 : vector<16x8xf32>
    %cst_34 = arith.constant 1.000000e+00 : f32
    %51 = vector.broadcast %cst_34 : f32 to vector<16x8xf32>
    %52 = arith.addf %51, %50 : vector<16x8xf32>
    %53 = arith.divf %51, %52 : vector<16x8xf32>
    %54 = arith.mulf %47, %53 : vector<16x8xf32>
    %c8_35 = arith.constant 8 : index
    %c12 = arith.constant 12 : index
    %55 = vector.load %arg9[%c8_35, %c12] : memref<32x28xf32, #tpu.memory_space<vmem>>, vector<16x8xf32>
    tpu.vector_store %arg9[%c8_35, %c12], %54 {strides = array<i32>} : memref<32x28xf32, #tpu.memory_space<vmem>>, vector<16x8xf32>,
    %c0_36 = arith.constant 0 : index
    %c0_37 = arith.constant 0 : index
    %c12_38 = arith.constant 12 : index
    %56 = vector.load %arg8[%c0_36, %c0_37, %c12_38] : memref<1x16x28xf32, #tpu.memory_space<vmem>>, vector<1x16x8xf32>
    %57 = vector.shape_cast %56 : vector<1x16x8xf32> to vector<16x8xf32>
    %58 = vector.shape_cast %54 : vector<16x8xf32> to vector<1x16x8xf32>
    tpu.vector_store %arg8[%c0_36, %c0_37, %c12_38], %58 {strides = array<i32>} : memref<1x16x28xf32, #tpu.memory_space<vmem>>, vector<1x16x8xf32>,
    %c4_39 = arith.constant 4 : index
    %c0_40 = arith.constant 0 : index
    %59 = vector.load %arg9[%c4_39, %c0_40] : memref<32x28xf32, #tpu.memory_space<vmem>>, vector<16x20xf32>
    %c12_41 = arith.constant 12 : index
    %c0_42 = arith.constant 0 : index
    %60 = vector.load %arg9[%c12_41, %c0_42] : memref<32x28xf32, #tpu.memory_space<vmem>>, vector<16x20xf32>
    %c0_43 = arith.constant 0 : index
    %c0_44 = arith.constant 0 : index
    %c0_45 = arith.constant 0 : index
    %61 = vector.load %arg6[%c0_43, %c0_44, %c0_45] : memref<2x20x16xf32, #tpu.memory_space<vmem>>, vector<1x20x16xf32>
    %62 = vector.shape_cast %61 : vector<1x20x16xf32> to vector<20x16xf32>
    %cst_46 = arith.constant dense<0.000000e+00> : vector<16x16xf32>
    %63 = tpu.matmul %59, %62, %cst_46 {dimension_numbers = #tpu.dot_dimension_numbers<[1], [0], [0], [1], [0, 0, 1, 1], [], []>} : vector<16x20xf32>, vector<20x16xf32>, vector<16x16xf32> -> vector<16x16xf32>
    %c1_47 = arith.constant 1 : index
    %c0_48 = arith.constant 0 : index
    %c0_49 = arith.constant 0 : index
    %64 = vector.load %arg6[%c1_47, %c0_48, %c0_49] : memref<2x20x16xf32, #tpu.memory_space<vmem>>, vector<1x20x16xf32>
    %65 = vector.shape_cast %64 : vector<1x20x16xf32> to vector<20x16xf32>
    %cst_50 = arith.constant dense<0.000000e+00> : vector<16x16xf32>
    %66 = tpu.matmul %60, %65, %cst_50 {dimension_numbers = #tpu.dot_dimension_numbers<[1], [0], [0], [1], [0, 0, 1, 1], [], []>} : vector<16x20xf32>, vector<20x16xf32>, vector<16x16xf32> -> vector<16x16xf32>
    %67 = arith.addf %63, %66 : vector<16x16xf32>
    %c0_51 = arith.constant 0 : index
    %c0_52 = arith.constant 0 : index
    %68 = vector.load %arg7[%c0_51, %c0_52] : memref<1x16xf32, #tpu.memory_space<vmem>>, vector<1x16xf32>
    %69 = vector.broadcast %68 : vector<1x16xf32> to vector<16x16xf32>
    %70 = arith.addf %67, %69 : vector<16x16xf32>
    %71 = vector.extract_strided_slice %70 {offsets = [0, 8], sizes = [16, 8], strides = [1, 1]} : vector<16x16xf32> to vector<16x8xf32>
    %72 = math.tanh %71 : vector<16x8xf32>
    %73 = vector.extract_strided_slice %70 {offsets = [0, 0], sizes = [16, 8], strides = [1, 1]} : vector<16x16xf32> to vector<16x8xf32>
    %74 = arith.negf %73 : vector<16x8xf32>
    %75 = math.exp %74 : vector<16x8xf32>
    %cst_53 = arith.constant 1.000000e+00 : f32
    %76 = vector.broadcast %cst_53 : f32 to vector<16x8xf32>
    %77 = arith.addf %76, %75 : vector<16x8xf32>
    %78 = arith.divf %76, %77 : vector<16x8xf32>
    %79 = arith.mulf %72, %78 : vector<16x8xf32>
    %c0_54 = arith.constant 0 : index
    %c0_55 = arith.constant 0 : index
    %c20 = arith.constant 20 : index
    %80 = vector.load %arg8[%c0_54, %c0_55, %c20] : memref<1x16x28xf32, #tpu.memory_space<vmem>>, vector<1x16x8xf32>
    %81 = vector.shape_cast %80 : vector<1x16x8xf32> to vector<16x8xf32>
    %82 = vector.shape_cast %79 : vector<16x8xf32> to vector<1x16x8xf32>
    tpu.vector_store %arg8[%c0_54, %c0_55, %c20], %82 {strides = array<i32>} : memref<1x16x28xf32, #tpu.memory_space<vmem>>, vector<1x16x8xf32>,
    return
  }
  func.func @transform_0(%arg0: i32) -> (i32, i32, i32) {
    %c0_i32 = arith.constant 0 : i32
    %c0_i32_0 = arith.constant 0 : i32
    %c0_i32_1 = arith.constant 0 : i32
    return %arg0, %c0_i32, %c0_i32_0 : i32, i32, i32
  }
  func.func @transform_1(%arg0: i32) -> (i32, i32, i32) {
    %c0_i32 = arith.constant 0 : i32
    %c0_i32_0 = arith.constant 0 : i32
    %c0_i32_1 = arith.constant 0 : i32
    %c0_i32_2 = arith.constant 0 : i32
    return %c0_i32, %c0_i32_0, %c0_i32_1 : i32, i32, i32
  }
  func.func @transform_2(%arg0: i32) -> (i32, i32) {
    %c0_i32 = arith.constant 0 : i32
    %c0_i32_0 = arith.constant 0 : i32
    %c0_i32_1 = arith.constant 0 : i32
    return %c0_i32, %c0_i32_0 : i32, i32
  }
  func.func @transform_3(%arg0: i32) -> (i32, i32, i32) {
    %c0_i32 = arith.constant 0 : i32
    %c0_i32_0 = arith.constant 0 : i32
    %c0_i32_1 = arith.constant 0 : i32
    %c0_i32_2 = arith.constant 0 : i32
    return %c0_i32, %c0_i32_0, %c0_i32_1 : i32, i32, i32
  }
  func.func @transform_4(%arg0: i32) -> (i32, i32) {
    %c0_i32 = arith.constant 0 : i32
    %c0_i32_0 = arith.constant 0 : i32
    %c0_i32_1 = arith.constant 0 : i32
    return %c0_i32, %c0_i32_0 : i32, i32
  }
  func.func @transform_5(%arg0: i32) -> (i32, i32, i32) {
    %c0_i32 = arith.constant 0 : i32
    %c0_i32_0 = arith.constant 0 : i32
    %c0_i32_1 = arith.constant 0 : i32
    %c0_i32_2 = arith.constant 0 : i32
    return %c0_i32, %c0_i32_0, %c0_i32_1 : i32, i32, i32
  }
  func.func @transform_6(%arg0: i32) -> (i32, i32) {
    %c0_i32 = arith.constant 0 : i32
    %c0_i32_0 = arith.constant 0 : i32
    %c0_i32_1 = arith.constant 0 : i32
    return %c0_i32, %c0_i32_0 : i32, i32
  }
  func.func @transform_7(%arg0: i32) -> (i32, i32, i32) {
    %c0_i32 = arith.constant 0 : i32
    %c0_i32_0 = arith.constant 0 : i32
    %c0_i32_1 = arith.constant 0 : i32
    return %arg0, %c0_i32, %c0_i32_0 : i32, i32, i32
  }
}

module attributes {stable_mosaic.version = 11 : i64} {
  func.func @_tc_block_kernel(%arg0: i32, %arg1: memref<1x16x4xf32, #tpu.memory_space<vmem>>, %arg2: memref<2x4x16xf32, #tpu.memory_space<vmem>>, %arg3: memref<1x16xf32, #tpu.memory_space<vmem>>, %arg4: memref<2x12x16xf32, #tpu.memory_space<vmem>>, %arg5: memref<1x16xf32, #tpu.memory_space<vmem>>, %arg6: memref<2x20x16xf32, #tpu.memory_space<vmem>>, %arg7: memref<1x16xf32, #tpu.memory_space<vmem>>, %arg8: memref<1x16x28xf32, #tpu.memory_space<vmem>>, %arg9: memref<32x28xf32, #tpu.memory_space<vmem>>) attributes {dimension_semantics = [#tpu.dimension_semantics<arbitrary>], iteration_bounds = array<i64: 2>, scalar_prefetch = 0 : i64, scratch_operands = 1 : i64, tpu.core_type = #tpu.core_type<tc>, window_params = [{transform_indices = @transform_0, window_bounds = array<i64: 1, 16, 4>}, {pipeline_mode = #tpu.pipeline_mode<synchronous>, transform_indices = @transform_1, window_bounds = array<i64: 2, 4, 16>}, {pipeline_mode = #tpu.pipeline_mode<synchronous>, transform_indices = @transform_2, window_bounds = array<i64: 1, 16>}, {pipeline_mode = #tpu.pipeline_mode<synchronous>, transform_indices = @transform_3, window_bounds = array<i64: 2, 12, 16>}, {pipeline_mode = #tpu.pipeline_mode<synchronous>, transform_indices = @transform_4, window_bounds = array<i64: 1, 16>}, {pipeline_mode = #tpu.pipeline_mode<synchronous>, transform_indices = @transform_5, window_bounds = array<i64: 2, 20, 16>}, {pipeline_mode = #tpu.pipeline_mode<synchronous>, transform_indices = @transform_6, window_bounds = array<i64: 1, 16>}, {transform_indices = @transform_7, window_bounds = array<i64: 1, 16, 28>}]} {
    %c0_i32 = arith.constant 0 : i32
    %0 = arith.cmpi eq, %arg0, %c0_i32 : i32
    %1 = arith.extui %0 : i1 to i32
    %c0_i32_0 = arith.constant 0 : i32
    %2 = arith.cmpi ne, %1, %c0_i32_0 : i32
    scf.if %2 {
      %cst_56 = arith.constant 0.000000e+00 : f32
      %83 = vector.broadcast %cst_56 : f32 to vector<8x28xf32>
      %c0_57 = arith.constant 0 : index
      %c0_58 = arith.constant 0 : index
      %84 = vector.load %arg9[%c0_57, %c0_58] : memref<32x28xf32, #tpu.memory_space<vmem>>, vector<8x28xf32>
      tpu.vector_store %arg9[%c0_57, %c0_58], %83 {strides = array<i32>} : memref<32x28xf32, #tpu.memory_space<vmem>>, vector<8x28xf32>,
      %c24 = arith.constant 24 : index
      %c0_59 = arith.constant 0 : index
      %85 = vector.load %arg9[%c24, %c0_59] : memref<32x28xf32, #tpu.memory_space<vmem>>, vector<8x28xf32>
      tpu.vector_store %arg9[%c24, %c0_59], %83 {strides = array<i32>} : memref<32x28xf32, #tpu.memory_space<vmem>>, vector<8x28xf32>,
    } else {
    }
    %c0 = arith.constant 0 : index
    %c0_1 = arith.constant 0 : index
    %c0_2 = arith.constant 0 : index
    %3 = vector.load %arg1[%c0, %c0_1, %c0_2] : memref<1x16x4xf32, #tpu.memory_space<vmem>>, vector<1x16x4xf32>
    %4 = vector.shape_cast %3 : vector<1x16x4xf32> to vector<16x4xf32>
    %c8 = arith.constant 8 : index
    %c0_3 = arith.constant 0 : index
    %5 = vector.load %arg9[%c8, %c0_3] : memref<32x28xf32, #tpu.memory_space<vmem>>, vector<16x4xf32>
    tpu.vector_store %arg9[%c8, %c0_3], %4 {strides = array<i32>} : memref<32x28xf32, #tpu.memory_space<vmem>>, vector<16x4xf32>,
    %c0_4 = arith.constant 0 : index
    %c0_5 = arith.constant 0 : index
    %c0_6 = arith.constant 0 : index
    %6 = vector.load %arg8[%c0_4, %c0_5, %c0_6] : memref<1x16x28xf32, #tpu.memory_space<vmem>>, vector<1x16x4xf32>
    %7 = vector.shape_cast %6 : vector<1x16x4xf32> to vector<16x4xf32>
    %8 = vector.shape_cast %4 : vector<16x4xf32> to vector<1x16x4xf32>
    tpu.vector_store %arg8[%c0_4, %c0_5, %c0_6], %8 {strides = array<i32>} : memref<1x16x28xf32, #tpu.memory_space<vmem>>, vector<1x16x4xf32>,
    %c7 = arith.constant 7 : index
    %c0_7 = arith.constant 0 : index
    %9 = vector.load %arg9[%c7, %c0_7] : memref<32x28xf32, #tpu.memory_space<vmem>>, vector<16x4xf32>
    %c9 = arith.constant 9 : index
    %c0_8 = arith.constant 0 : index
    %10 = vector.load %arg9[%c9, %c0_8] : memref<32x28xf32, #tpu.memory_space<vmem>>, vector<16x4xf32>
    %c0_9 = arith.constant 0 : index
    %c0_10 = arith.constant 0 : index
    %c0_11 = arith.constant 0 : index
    %11 = vector.load %arg2[%c0_9, %c0_10, %c0_11] : memref<2x4x16xf32, #tpu.memory_space<vmem>>, vector<1x4x16xf32>
    %12 = vector.shape_cast %11 : vector<1x4x16xf32> to vector<4x16xf32>
    %cst = arith.constant dense<0.000000e+00> : vector<16x16xf32>
    %13 = tpu.matmul %9, %12, %cst {dimension_numbers = #tpu.dot_dimension_numbers<[1], [0], [0], [1], [0, 0, 1, 1], [], []>} : vector<16x4xf32>, vector<4x16xf32>, vector<16x16xf32> -> vector<16x16xf32>
    %c1 = arith.constant 1 : index
    %c0_12 = arith.constant 0 : index
    %c0_13 = arith.constant 0 : index
    %14 = vector.load %arg2[%c1, %c0_12, %c0_13] : memref<2x4x16xf32, #tpu.memory_space<vmem>>, vector<1x4x16xf32>
    %15 = vector.shape_cast %14 : vector<1x4x16xf32> to vector<4x16xf32>
    %cst_14 = arith.constant dense<0.000000e+00> : vector<16x16xf32>
    %16 = tpu.matmul %10, %15, %cst_14 {dimension_numbers = #tpu.dot_dimension_numbers<[1], [0], [0], [1], [0, 0, 1, 1], [], []>} : vector<16x4xf32>, vector<4x16xf32>, vector<16x16xf32> -> vector<16x16xf32>
    %17 = arith.addf %13, %16 : vector<16x16xf32>
    %c0_15 = arith.constant 0 : index
    %c0_16 = arith.constant 0 : index
    %18 = vector.load %arg3[%c0_15, %c0_16] : memref<1x16xf32, #tpu.memory_space<vmem>>, vector<1x16xf32>
    %19 = vector.broadcast %18 : vector<1x16xf32> to vector<16x16xf32>
    %20 = arith.addf %17, %19 : vector<16x16xf32>
    %21 = vector.extract_strided_slice %20 {offsets = [0, 8], sizes = [16, 8], strides = [1, 1]} : vector<16x16xf32> to vector<16x8xf32>
    %22 = math.tanh %21 : vector<16x8xf32>
    %23 = vector.extract_strided_slice %20 {offsets = [0, 0], sizes = [16, 8], strides = [1, 1]} : vector<16x16xf32> to vector<16x8xf32>
    %24 = arith.negf %23 : vector<16x8xf32>
    %25 = math.exp %24 : vector<16x8xf32>
    %cst_17 = arith.constant 1.000000e+00 : f32
    %26 = vector.broadcast %cst_17 : f32 to vector<16x8xf32>
    %27 = arith.addf %26, %25 : vector<16x8xf32>
    %28 = arith.divf %26, %27 : vector<16x8xf32>
    %29 = arith.mulf %22, %28 : vector<16x8xf32>
    %c8_18 = arith.constant 8 : index
    %c4 = arith.constant 4 : index
    %30 = vector.load %arg9[%c8_18, %c4] : memref<32x28xf32, #tpu.memory_space<vmem>>, vector<16x8xf32>
    tpu.vector_store %arg9[%c8_18, %c4], %29 {strides = array<i32>} : memref<32x28xf32, #tpu.memory_space<vmem>>, vector<16x8xf32>,
    %c0_19 = arith.constant 0 : index
    %c0_20 = arith.constant 0 : index
    %c4_21 = arith.constant 4 : index
    %31 = vector.load %arg8[%c0_19, %c0_20, %c4_21] : memref<1x16x28xf32, #tpu.memory_space<vmem>>, vector<1x16x8xf32>
    %32 = vector.shape_cast %31 : vector<1x16x8xf32> to vector<16x8xf32>
    %33 = vector.shape_cast %29 : vector<16x8xf32> to vector<1x16x8xf32>
    tpu.vector_store %arg8[%c0_19, %c0_20, %c4_21], %33 {strides = array<i32>} : memref<1x16x28xf32, #tpu.memory_space<vmem>>, vector<1x16x8xf32>,
    %c6 = arith.constant 6 : index
    %c0_22 = arith.constant 0 : index
    %34 = vector.load %arg9[%c6, %c0_22] : memref<32x28xf32, #tpu.memory_space<vmem>>, vector<16x12xf32>
    %c10 = arith.constant 10 : index
    %c0_23 = arith.constant 0 : index
    %35 = vector.load %arg9[%c10, %c0_23] : memref<32x28xf32, #tpu.memory_space<vmem>>, vector<16x12xf32>
    %c0_24 = arith.constant 0 : index
    %c0_25 = arith.constant 0 : index
    %c0_26 = arith.constant 0 : index
    %36 = vector.load %arg4[%c0_24, %c0_25, %c0_26] : memref<2x12x16xf32, #tpu.memory_space<vmem>>, vector<1x12x16xf32>
    %37 = vector.shape_cast %36 : vector<1x12x16xf32> to vector<12x16xf32>
    %cst_27 = arith.constant dense<0.000000e+00> : vector<16x16xf32>
    %38 = tpu.matmul %34, %37, %cst_27 {dimension_numbers = #tpu.dot_dimension_numbers<[1], [0], [0], [1], [0, 0, 1, 1], [], []>} : vector<16x12xf32>, vector<12x16xf32>, vector<16x16xf32> -> vector<16x16xf32>
    %c1_28 = arith.constant 1 : index
    %c0_29 = arith.constant 0 : index
    %c0_30 = arith.constant 0 : index
    %39 = vector.load %arg4[%c1_28, %c0_29, %c0_30] : memref<2x12x16xf32, #tpu.memory_space<vmem>>, vector<1x12x16xf32>
    %40 = vector.shape_cast %39 : vector<1x12x16xf32> to vector<12x16xf32>
    %cst_31 = arith.constant dense<0.000000e+00> : vector<16x16xf32>
    %41 = tpu.matmul %35, %40, %cst_31 {dimension_numbers = #tpu.dot_dimension_numbers<[1], [0], [0], [1], [0, 0, 1, 1], [], []>} : vector<16x12xf32>, vector<12x16xf32>, vector<16x16xf32> -> vector<16x16xf32>
    %42 = arith.addf %38, %41 : vector<16x16xf32>
    %c0_32 = arith.constant 0 : index
    %c0_33 = arith.constant 0 : index
    %43 = vector.load %arg5[%c0_32, %c0_33] : memref<1x16xf32, #tpu.memory_space<vmem>>, vector<1x16xf32>
    %44 = vector.broadcast %43 : vector<1x16xf32> to vector<16x16xf32>
    %45 = arith.addf %42, %44 : vector<16x16xf32>
    %46 = vector.extract_strided_slice %45 {offsets = [0, 8], sizes = [16, 8], strides = [1, 1]} : vector<16x16xf32> to vector<16x8xf32>
    %47 = math.tanh %46 : vector<16x8xf32>
    %48 = vector.extract_strided_slice %45 {offsets = [0, 0], sizes = [16, 8], strides = [1, 1]} : vector<16x16xf32> to vector<16x8xf32>
    %49 = arith.negf %48 : vector<16x8xf32>
    %50 = math.exp %49 : vector<16x8xf32>
    %cst_34 = arith.constant 1.000000e+00 : f32
    %51 = vector.broadcast %cst_34 : f32 to vector<16x8xf32>
    %52 = arith.addf %51, %50 : vector<16x8xf32>
    %53 = arith.divf %51, %52 : vector<16x8xf32>
    %54 = arith.mulf %47, %53 : vector<16x8xf32>
    %c8_35 = arith.constant 8 : index
    %c12 = arith.constant 12 : index
    %55 = vector.load %arg9[%c8_35, %c12] : memref<32x28xf32, #tpu.memory_space<vmem>>, vector<16x8xf32>
    tpu.vector_store %arg9[%c8_35, %c12], %54 {strides = array<i32>} : memref<32x28xf32, #tpu.memory_space<vmem>>, vector<16x8xf32>,
    %c0_36 = arith.constant 0 : index
    %c0_37 = arith.constant 0 : index
    %c12_38 = arith.constant 12 : index
    %56 = vector.load %arg8[%c0_36, %c0_37, %c12_38] : memref<1x16x28xf32, #tpu.memory_space<vmem>>, vector<1x16x8xf32>
    %57 = vector.shape_cast %56 : vector<1x16x8xf32> to vector<16x8xf32>
    %58 = vector.shape_cast %54 : vector<16x8xf32> to vector<1x16x8xf32>
    tpu.vector_store %arg8[%c0_36, %c0_37, %c12_38], %58 {strides = array<i32>} : memref<1x16x28xf32, #tpu.memory_space<vmem>>, vector<1x16x8xf32>,
    %c4_39 = arith.constant 4 : index
    %c0_40 = arith.constant 0 : index
    %59 = vector.load %arg9[%c4_39, %c0_40] : memref<32x28xf32, #tpu.memory_space<vmem>>, vector<16x20xf32>
    %c12_41 = arith.constant 12 : index
    %c0_42 = arith.constant 0 : index
    %60 = vector.load %arg9[%c12_41, %c0_42] : memref<32x28xf32, #tpu.memory_space<vmem>>, vector<16x20xf32>
    %c0_43 = arith.constant 0 : index
    %c0_44 = arith.constant 0 : index
    %c0_45 = arith.constant 0 : index
    %61 = vector.load %arg6[%c0_43, %c0_44, %c0_45] : memref<2x20x16xf32, #tpu.memory_space<vmem>>, vector<1x20x16xf32>
    %62 = vector.shape_cast %61 : vector<1x20x16xf32> to vector<20x16xf32>
    %cst_46 = arith.constant dense<0.000000e+00> : vector<16x16xf32>
    %63 = tpu.matmul %59, %62, %cst_46 {dimension_numbers = #tpu.dot_dimension_numbers<[1], [0], [0], [1], [0, 0, 1, 1], [], []>} : vector<16x20xf32>, vector<20x16xf32>, vector<16x16xf32> -> vector<16x16xf32>
    %c1_47 = arith.constant 1 : index
    %c0_48 = arith.constant 0 : index
    %c0_49 = arith.constant 0 : index
    %64 = vector.load %arg6[%c1_47, %c0_48, %c0_49] : memref<2x20x16xf32, #tpu.memory_space<vmem>>, vector<1x20x16xf32>
    %65 = vector.shape_cast %64 : vector<1x20x16xf32> to vector<20x16xf32>
    %cst_50 = arith.constant dense<0.000000e+00> : vector<16x16xf32>
    %66 = tpu.matmul %60, %65, %cst_50 {dimension_numbers = #tpu.dot_dimension_numbers<[1], [0], [0], [1], [0, 0, 1, 1], [], []>} : vector<16x20xf32>, vector<20x16xf32>, vector<16x16xf32> -> vector<16x16xf32>
    %67 = arith.addf %63, %66 : vector<16x16xf32>
    %c0_51 = arith.constant 0 : index
    %c0_52 = arith.constant 0 : index
    %68 = vector.load %arg7[%c0_51, %c0_52] : memref<1x16xf32, #tpu.memory_space<vmem>>, vector<1x16xf32>
    %69 = vector.broadcast %68 : vector<1x16xf32> to vector<16x16xf32>
    %70 = arith.addf %67, %69 : vector<16x16xf32>
    %71 = vector.extract_strided_slice %70 {offsets = [0, 8], sizes = [16, 8], strides = [1, 1]} : vector<16x16xf32> to vector<16x8xf32>
    %72 = math.tanh %71 : vector<16x8xf32>
    %73 = vector.extract_strided_slice %70 {offsets = [0, 0], sizes = [16, 8], strides = [1, 1]} : vector<16x16xf32> to vector<16x8xf32>
    %74 = arith.negf %73 : vector<16x8xf32>
    %75 = math.exp %74 : vector<16x8xf32>
    %cst_53 = arith.constant 1.000000e+00 : f32
    %76 = vector.broadcast %cst_53 : f32 to vector<16x8xf32>
    %77 = arith.addf %76, %75 : vector<16x8xf32>
    %78 = arith.divf %76, %77 : vector<16x8xf32>
    %79 = arith.mulf %72, %78 : vector<16x8xf32>
    %c0_54 = arith.constant 0 : index
    %c0_55 = arith.constant 0 : index
    %c20 = arith.constant 20 : index
    %80 = vector.load %arg8[%c0_54, %c0_55, %c20] : memref<1x16x28xf32, #tpu.memory_space<vmem>>, vector<1x16x8xf32>
    %81 = vector.shape_cast %80 : vector<1x16x8xf32> to vector<16x8xf32>
    %82 = vector.shape_cast %79 : vector<16x8xf32> to vector<1x16x8xf32>
    tpu.vector_store %arg8[%c0_54, %c0_55, %c20], %82 {strides = array<i32>} : memref<1x16x28xf32, #tpu.memory_space<vmem>>, vector<1x16x8xf32>,
    return
  }
  func.func @transform_0(%arg0: i32) -> (i32, i32, i32) {
    %c0_i32 = arith.constant 0 : i32
    %c0_i32_0 = arith.constant 0 : i32
    %c0_i32_1 = arith.constant 0 : i32
    return %arg0, %c0_i32, %c0_i32_0 : i32, i32, i32
  }
  func.func @transform_1(%arg0: i32) -> (i32, i32, i32) {
    %c0_i32 = arith.constant 0 : i32
    %c0_i32_0 = arith.constant 0 : i32
    %c0_i32_1 = arith.constant 0 : i32
    %c0_i32_2 = arith.constant 0 : i32
    return %c0_i32, %c0_i32_0, %c0_i32_1 : i32, i32, i32
  }
  func.func @transform_2(%arg0: i32) -> (i32, i32) {
    %c0_i32 = arith.constant 0 : i32
    %c0_i32_0 = arith.constant 0 : i32
    %c0_i32_1 = arith.constant 0 : i32
    return %c0_i32, %c0_i32_0 : i32, i32
  }
  func.func @transform_3(%arg0: i32) -> (i32, i32, i32) {
    %c0_i32 = arith.constant 0 : i32
    %c0_i32_0 = arith.constant 0 : i32
    %c0_i32_1 = arith.constant 0 : i32
    %c0_i32_2 = arith.constant 0 : i32
    return %c0_i32, %c0_i32_0, %c0_i32_1 : i32, i32, i32
  }
  func.func @transform_4(%arg0: i32) -> (i32, i32) {
    %c0_i32 = arith.constant 0 : i32
    %c0_i32_0 = arith.constant 0 : i32
    %c0_i32_1 = arith.constant 0 : i32
    return %c0_i32, %c0_i32_0 : i32, i32
  }
  func.func @transform_5(%arg0: i32) -> (i32, i32, i32) {
    %c0_i32 = arith.constant 0 : i32
    %c0_i32_0 = arith.constant 0 : i32
    %c0_i32_1 = arith.constant 0 : i32
    %c0_i32_2 = arith.constant 0 : i32
    return %c0_i32, %c0_i32_0, %c0_i32_1 : i32, i32, i32
  }
  func.func @transform_6(%arg0: i32) -> (i32, i32) {
    %c0_i32 = arith.constant 0 : i32
    %c0_i32_0 = arith.constant 0 : i32
    %c0_i32_1 = arith.constant 0 : i32
    return %c0_i32, %c0_i32_0 : i32, i32
  }
  func.func @transform_7(%arg0: i32) -> (i32, i32, i32) {
    %c0_i32 = arith.constant 0 : i32
    %c0_i32_0 = arith.constant 0 : i32
    %c0_i32_1 = arith.constant 0 : i32
    return %arg0, %c0_i32, %c0_i32_0 : i32, i32, i32
  }
}

</mosaic_0001>

<llo_original>
// kernel: tpu_custom_call.1
$region0: #{tpu_custom_call.1}
  #allocation0 [shape = 'u32[]', space=smem, size = 0x4, offset = 0x4, fixed_abs, tag = 'smem constant byte address 0x4 - core index']
  #allocation1 [shape = 'u32[144,128]{1,0:T(1,128)}', space=vmem, size = 0x12000, scoped, tag = 'internal scratch']
  #allocation2 [shape = 'f32[32,28]{1,0:T(8,128)}', space=vmem, size = 0x4000, scoped, tag = 'scratch operand']
  %s0 = inlined_call_operand.vmem [shape: f32[2,16,4], index: 0, kind: input, shape index: {}]
  %s1 = inlined_call_operand.vmem [shape: f32[2,4,16], index: 1, kind: input, shape index: {}]
  %s2 = inlined_call_operand.vmem [shape: f32[1,16], index: 2, kind: input, shape index: {}]
  %s3 = inlined_call_operand.vmem [shape: f32[2,12,16], index: 3, kind: input, shape index: {}]
  %s4 = inlined_call_operand.vmem [shape: f32[1,16], index: 4, kind: input, shape index: {}]
  %s5 = inlined_call_operand.vmem [shape: f32[2,20,16], index: 5, kind: input, shape index: {}]
  %s6 = inlined_call_operand.vmem [shape: f32[1,16], index: 6, kind: input, shape index: {}]
  %s7 = inlined_call_operand.hbm [shape: f32[2,16,28], index: 7, kind: output, shape index: {}]
  %s8 = sld [smem:[#allocation0]]
  $region65: #{tpu_custom_call.1} parent=0
    _
  %s10 = ssub.s32 1, %s8
  %s11 = scalar_select 0, %s10, %s8
  $region1: #{tpu_custom_call.1} parent=0
    #allocation3 [shape = 'u8[16384]{0}', space=vmem, size = 0x4000, scoped, tag = 'output window, operand 0']
    #allocation4 [shape = 's32[2]{0}', space=sflag, size = 0x8, scoped, tag = 'scoped memory for tpu_custom_call.1']
    %12 = vsyncpa [#allocation4], 0
    %s13 = scalar_lea.sflag [#allocation4], 1
    %14 = vsyncpa %s13, 0
    loop: start=0, step=1, limit=4
    $region2: #{tpu_custom_call.1} parent=1 // loop_pre_header
      _
    $region3: #{tpu_custom_call.1} parent=1 // loop_header
      %s16 = sphi 0, %s20
      %p17 = scmp.ge.s32.totalorder %s16, 4
      %s26 = sphi 0, %s28
      %s29 = sphi 0, %s26
      %s30 = sphi 0, %s29
      %s46 = sphi 0, %s30
      %s50 = sphi 0, %s50
      %s52 = sphi 0, %s50
      %s53 = sphi 0, %s52
      %s67 = sphi 0, %s53
      %s71 = sphi 0, %s71
      %s73 = sphi 0, %s71
      %s74 = sphi 0, %s73
      %s88 = sphi 0, %s74
      %s92 = sphi 0, %s92
      %s94 = sphi 0, %s92
      %s95 = sphi 0, %s94
      %s109 = sphi 0, %s95
      %s113 = sphi 0, %s113
      %s115 = sphi 0, %s113
      %s116 = sphi 0, %s115
      %s130 = sphi 0, %s116
      %s134 = sphi 0, %s134
      %s136 = sphi 0, %s134
      %s137 = sphi 0, %s136
      %s151 = sphi 0, %s137
      %s155 = sphi 0, %s155
      %s157 = sphi 0, %s155
      %s158 = sphi 0, %s157
      %s172 = sphi 0, %s158
      %s178 = sphi 0, %s180
      %s181 = sphi 0, %s178
      %s182 = sphi 0, %s181
      %s198 = sphi 0, %s182
    $region4: #{tpu_custom_call.1} parent=1 // loop_header_branch
      %19 = sbr.rel (%p17) target = $region8
    $region5: #{tpu_custom_call.1} parent=1 // loop_body
      %s21 = ssub.s32 %s16, 1
      %s22 = ssub.s32 %s16, 2
      %s23 = sadd.s32 %s16, 1
      %s24 = ssub.s32 %s16, %s23
      %p25 = scmp.eq.s32.totalorder %s24, 0
      %s27 = sadd.s32 %s26, 1
      %s28 = scalar_select %p25, %s26, %s27
      %p31 = pneg %p25
      %p32 = scmp.eq.s32.totalorder %s16, 1
      %p33 = por %p31, %p32
      %p34 = scmp.ne.s32.totalorder %s26, %s29
      %p35 = scmp.eq.s32.totalorder %s16, 0
      %p36 = por %p34, %p35
      %p37 = scmp.ne.s32.totalorder %s26, %s29
      %p38 = scmp.eq.s32.totalorder %s21, 1
      %p39 = por %p37, %p38
      %p40 = scmp.ne.s32.totalorder %s29, %s30
      %p41 = scmp.eq.s32.totalorder %s21, 0
      %p42 = por %p40, %p41
      %p43 = scmp.ne.s32.totalorder %s29, %s30
      %p44 = scmp.eq.s32.totalorder %s22, 1
      %p45 = por %p43, %p44
      %p47 = scmp.ne.s32.totalorder %s30, %s46
      %p48 = scmp.eq.s32.totalorder %s22, 0
      %p49 = por %p47, %p48
      %s51 = sadd.s32 %s50, 1
      %p54 = scmp.eq.s32.totalorder %s16, 1
      %p55 = scmp.ne.s32.totalorder %s50, %s52
      %p56 = scmp.eq.s32.totalorder %s16, 0
      %p57 = por %p55, %p56
      %p58 = scmp.ne.s32.totalorder %s50, %s52
      %p59 = scmp.eq.s32.totalorder %s21, 1
      %p60 = por %p58, %p59
      %p61 = scmp.ne.s32.totalorder %s52, %s53
      %p62 = scmp.eq.s32.totalorder %s21, 0
      %p63 = por %p61, %p62
      %p64 = scmp.ne.s32.totalorder %s52, %s53
      %p65 = scmp.eq.s32.totalorder %s22, 1
      %p66 = por %p64, %p65
      %p68 = scmp.ne.s32.totalorder %s53, %s67
      %p69 = scmp.eq.s32.totalorder %s22, 0
      %p70 = por %p68, %p69
      %s72 = sadd.s32 %s71, 1
      %p75 = scmp.eq.s32.totalorder %s16, 1
      %p76 = scmp.ne.s32.totalorder %s71, %s73
      %p77 = scmp.eq.s32.totalorder %s16, 0
      %p78 = por %p76, %p77
      %p79 = scmp.ne.s32.totalorder %s71, %s73
      %p80 = scmp.eq.s32.totalorder %s21, 1
      %p81 = por %p79, %p80
      %p82 = scmp.ne.s32.totalorder %s73, %s74
      %p83 = scmp.eq.s32.totalorder %s21, 0
      %p84 = por %p82, %p83
      %p85 = scmp.ne.s32.totalorder %s73, %s74
      %p86 = scmp.eq.s32.totalorder %s22, 1
      %p87 = por %p85, %p86
      %p89 = scmp.ne.s32.totalorder %s74, %s88
      %p90 = scmp.eq.s32.totalorder %s22, 0
      %p91 = por %p89, %p90
      %s93 = sadd.s32 %s92, 1
      %p96 = scmp.eq.s32.totalorder %s16, 1
      %p97 = scmp.ne.s32.totalorder %s92, %s94
      %p98 = scmp.eq.s32.totalorder %s16, 0
      %p99 = por %p97, %p98
      %p100 = scmp.ne.s32.totalorder %s92, %s94
      %p101 = scmp.eq.s32.totalorder %s21, 1
      %p102 = por %p100, %p101
      %p103 = scmp.ne.s32.totalorder %s94, %s95
      %p104 = scmp.eq.s32.totalorder %s21, 0
      %p105 = por %p103, %p104
      %p106 = scmp.ne.s32.totalorder %s94, %s95
      %p107 = scmp.eq.s32.totalorder %s22, 1
      %p108 = por %p106, %p107
      %p110 = scmp.ne.s32.totalorder %s95, %s109
      %p111 = scmp.eq.s32.totalorder %s22, 0
      %p112 = por %p110, %p111
      %s114 = sadd.s32 %s113, 1
      %p117 = scmp.eq.s32.totalorder %s16, 1
      %p118 = scmp.ne.s32.totalorder %s113, %s115
      %p119 = scmp.eq.s32.totalorder %s16, 0
      %p120 = por %p118, %p119
      %p121 = scmp.ne.s32.totalorder %s113, %s115
      %p122 = scmp.eq.s32.totalorder %s21, 1
      %p123 = por %p121, %p122
      %p124 = scmp.ne.s32.totalorder %s115, %s116
      %p125 = scmp.eq.s32.totalorder %s21, 0
      %p126 = por %p124, %p125
      %p127 = scmp.ne.s32.totalorder %s115, %s116
      %p128 = scmp.eq.s32.totalorder %s22, 1
      %p129 = por %p127, %p128
      %p131 = scmp.ne.s32.totalorder %s116, %s130
      %p132 = scmp.eq.s32.totalorder %s22, 0
      %p133 = por %p131, %p132
      %s135 = sadd.s32 %s134, 1
      %p138 = scmp.eq.s32.totalorder %s16, 1
      %p139 = scmp.ne.s32.totalorder %s134, %s136
      %p140 = scmp.eq.s32.totalorder %s16, 0
      %p141 = por %p139, %p140
      %p142 = scmp.ne.s32.totalorder %s134, %s136
      %p143 = scmp.eq.s32.totalorder %s21, 1
      %p144 = por %p142, %p143
      %p145 = scmp.ne.s32.totalorder %s136, %s137
      %p146 = scmp.eq.s32.totalorder %s21, 0
      %p147 = por %p145, %p146
      %p148 = scmp.ne.s32.totalorder %s136, %s137
      %p149 = scmp.eq.s32.totalorder %s22, 1
      %p150 = por %p148, %p149
      %p152 = scmp.ne.s32.totalorder %s137, %s151
      %p153 = scmp.eq.s32.totalorder %s22, 0
      %p154 = por %p152, %p153
      %s156 = sadd.s32 %s155, 1
      %p159 = scmp.eq.s32.totalorder %s16, 1
      %p160 = scmp.ne.s32.totalorder %s155, %s157
      %p161 = scmp.eq.s32.totalorder %s16, 0
      %p162 = por %p160, %p161
      %p163 = scmp.ne.s32.totalorder %s155, %s157
      %p164 = scmp.eq.s32.totalorder %s21, 1
      %p165 = por %p163, %p164
      %p166 = scmp.ne.s32.totalorder %s157, %s158
      %p167 = scmp.eq.s32.totalorder %s21, 0
      %p168 = por %p166, %p167
      %p169 = scmp.ne.s32.totalorder %s157, %s158
      %p170 = scmp.eq.s32.totalorder %s22, 1
      %p171 = por %p169, %p170
      %p173 = scmp.ne.s32.totalorder %s158, %s172
      %p174 = scmp.eq.s32.totalorder %s22, 0
      %p175 = por %p173, %p174
      %s176 = ssub.s32 %s16, %s23
      %p177 = scmp.eq.s32.totalorder %s176, 0
      %s179 = sadd.s32 %s178, 1
      %s180 = scalar_select %p177, %s178, %s179
      %p183 = pneg %p177
      %p184 = scmp.eq.s32.totalorder %s16, 1
      %p185 = por %p183, %p184
      %p186 = scmp.ne.s32.totalorder %s178, %s181
      %p187 = scmp.eq.s32.totalorder %s16, 0
      %p188 = por %p186, %p187
      %p189 = scmp.ne.s32.totalorder %s178, %s181
      %p190 = scmp.eq.s32.totalorder %s21, 1
      %p191 = por %p189, %p190
      %p192 = scmp.ne.s32.totalorder %s181, %s182
      %p193 = scmp.eq.s32.totalorder %s21, 0
      %p194 = por %p192, %p193
      %p195 = scmp.ne.s32.totalorder %s181, %s182
      %p196 = scmp.eq.s32.totalorder %s22, 1
      %p197 = por %p195, %p196
      %p199 = scmp.ne.s32.totalorder %s182, %s198
      %p200 = scmp.eq.s32.totalorder %s22, 0
      %p201 = por %p199, %p200
      %p202 = scmp.le.s32.totalorder 1, %s16
      %p203 = scmp.lt.s32.totalorder %s16, 3
      %p204 = pnand %p202, %p203
      %p205 = pneg %p204
      // Predicated region
      $region9: #{tpu_custom_call.1} parent=5 // pred_check
        _
      $region10: #{tpu_custom_call.1} parent=5 // pred_check_branch
        %207 = sbr.rel (%p204) target = $region12
      $region11: #{tpu_custom_call.1} parent=5 // pred_region
        %s208 = ssub.s32 %s16, 1
        // Predicated region
        $region13: #{tpu_custom_call.1} parent=11 // pred_check
          %p209 = pneg %p63
        $region14: #{tpu_custom_call.1} parent=11 // pred_check_branch
          %211 = sbr.rel (%p209) target = $region16
        $region15: #{tpu_custom_call.1} parent=11 // pred_region
          _
        $region16: #{tpu_custom_call.1} parent=11 // pred_fallthru
          _
        // Predicated region
        $region17: #{tpu_custom_call.1} parent=11 // pred_check
          %p212 = pneg %p84
        $region18: #{tpu_custom_call.1} parent=11 // pred_check_branch
          %214 = sbr.rel (%p212) target = $region20
        $region19: #{tpu_custom_call.1} parent=11 // pred_region
          _
        $region20: #{tpu_custom_call.1} parent=11 // pred_fallthru
          _
        // Predicated region
        $region21: #{tpu_custom_call.1} parent=11 // pred_check
          %p215 = pneg %p105
        $region22: #{tpu_custom_call.1} parent=11 // pred_check_branch
          %217 = sbr.rel (%p215) target = $region24
        $region23: #{tpu_custom_call.1} parent=11 // pred_region
          _
        $region24: #{tpu_custom_call.1} parent=11 // pred_fallthru
          _
        // Predicated region
        $region25: #{tpu_custom_call.1} parent=11 // pred_check
          %p218 = pneg %p126
        $region26: #{tpu_custom_call.1} parent=11 // pred_check_branch
          %220 = sbr.rel (%p218) target = $region28
        $region27: #{tpu_custom_call.1} parent=11 // pred_region
          _
        $region28: #{tpu_custom_call.1} parent=11 // pred_fallthru
          _
        // Predicated region
        $region29: #{tpu_custom_call.1} parent=11 // pred_check
          %p221 = pneg %p147
        $region30: #{tpu_custom_call.1} parent=11 // pred_check_branch
          %223 = sbr.rel (%p221) target = $region32
        $region31: #{tpu_custom_call.1} parent=11 // pred_region
          _
        $region32: #{tpu_custom_call.1} parent=11 // pred_fallthru
          _
        // Predicated region
        $region33: #{tpu_custom_call.1} parent=11 // pred_check
          %p224 = pneg %p168
        $region34: #{tpu_custom_call.1} parent=11 // pred_check_branch
          %226 = sbr.rel (%p224) target = $region36
        $region35: #{tpu_custom_call.1} parent=11 // pred_region
          _
        $region36: #{tpu_custom_call.1} parent=11 // pred_fallthru
          _
      $region12: #{tpu_custom_call.1} parent=5 // pred_fallthru
        _
      %p227 = scmp.lt.s32.totalorder %s16, 2
      // Predicated region
      $region37: #{tpu_custom_call.1} parent=5 // pred_check
        %p228 = pneg %p227
      $region38: #{tpu_custom_call.1} parent=5 // pred_check_branch
        %230 = sbr.rel (%p228) target = $region40
      $region39: #{tpu_custom_call.1} parent=5 // pred_region
        // Predicated region
        $region41: #{tpu_custom_call.1} parent=39 // pred_check
          %p231 = pneg %p36
        $region42: #{tpu_custom_call.1} parent=39 // pred_check_branch
          %233 = sbr.rel (%p231) target = $region44
        $region43: #{tpu_custom_call.1} parent=39 // pred_region
          %p234 = scmp.lt.s32.totalorder %s16, 1
          %s235 = scalar_select %p234, %s16, 1
          %s236 = smul.addr %s235, 2
          %s237 = smul.addr %s236, 8
          %s238 = scalar_lea.vmem %s0, %s237
        $region44: #{tpu_custom_call.1} parent=39 // pred_fallthru
          _
      $region40: #{tpu_custom_call.1} parent=5 // pred_fallthru
        _
      %p239 = scmp.le.s32.totalorder 1, %s16
      %p240 = scmp.lt.s32.totalorder %s16, 3
      %p241 = pnand %p239, %p240
      %p242 = pneg %p241
      // Predicated region
      $region45: #{tpu_custom_call.1} parent=5 // pred_check
        _
      $region46: #{tpu_custom_call.1} parent=5 // pred_check_branch
        %244 = sbr.rel (%p241) target = $region48
      $region47: #{tpu_custom_call.1} parent=5 // pred_region
        %s245 = ssub.s32 %s16, 1
        %p246 = scmp.lt.s32.totalorder %s21, 1
        %s247 = scalar_select %p246, %s21, 1
        %s248 = smul.addr %s247, 2
        %s249 = smul.addr %s248, 8
        %s250 = scalar_lea.vmem %s0, %s249
        %p251 = pneg %p42
        %p252 = pneg %p39
        %p253 = pneg %p63
        %p254 = pneg %p60
        %p255 = pneg %p84
        %p256 = pneg %p81
        %p257 = pneg %p105
        %p258 = pneg %p102
        %p259 = pneg %p126
        %p260 = pneg %p123
        %p261 = pneg %p147
        %p262 = pneg %p144
        %p263 = pneg %p168
        %p264 = pneg %p165
        %p265 = pneg %p194
        %p266 = pneg %p191
        %s267 = sand.u32 %s181, 1
        %s268 = scalar_lea.sflag [#allocation4], %s267
        %s269 = sand.u32 %s181, 1
        %s270 = smul.addr %s269, 16
        %s271 = scalar_lea.vmem [#allocation3], %s270
        %p272 = scmp.lt.s32.totalorder %s21, 1
        %s273 = scalar_select %p272, %s21, 1
        %s274 = smul.addr %s273, 2
        %s275 = smul.addr %s274, 8
        %s276 = scalar_lea.vmem %s0, %s275
        %p277 = scmp.eq.s32.totalorder %s21, 0
        // Predicated region
        $region49: #{tpu_custom_call.1} parent=47 // pred_check
          %p278 = pneg %p277
        $region50: #{tpu_custom_call.1} parent=47 // pred_check_branch
          %280 = sbr.rel (%p278) target = $region52
        $region51: #{tpu_custom_call.1} parent=47 // pred_region
          %vm281 = vcmask 228352
          %282 = vst.msk [vmem:[#allocation2] sm:$0xff] %vm281, 0.0
          %283 = vst.msk [vmem:[#allocation2 + $0x18] sm:$0xff] %vm281, 0.0
        $region52: #{tpu_custom_call.1} parent=47 // pred_fallthru
          _
        %v284 = vld [vmem:[%s276] sm:$0xff]
        %v285 = vld [vmem:[%s276 + $0x8] sm:$0xff]
        %vm286 = vcmask 31744
        %287 = vst.msk [vmem:[#allocation2 + $0x8] sm:$0xff] %vm286, %v284
        %288 = vst.msk [vmem:[#allocation2 + $0x10] sm:$0xff] %vm286, %v285
        %289 = vst.msk [vmem:[%s271] sm:$0xff] %vm286, %v284
        %290 = vst.msk [vmem:[%s271 + $0x8] sm:$0xff] %vm286, %v285
        %v291 = vld [vmem:[#allocation2 + $0x7] sm:$0xff]
        %v292 = vld [vmem:[#allocation2 + $0xf] sm:$0xff]
        %v293 = vld [vmem:[#allocation2 + $0x9] sm:$0xff]
        %v294 = vld [vmem:[#allocation2 + $0x11] sm:$0xff]
        %v295 = vld [vmem:[%s1] sm:$0xf]
        %s296 = scalar_lea.vmem %s1, 4
        %v297 = vld [vmem:[%s296] sm:$0xf]
        %v299 = vsel %vm286, %v293, 0
        %v302 = vsel %vm286, %v294, 0
        %vm304 = vcmask 1043456
        %v306 = vsel %vm304, %v297, 0
        %308 = vmatprep.subr.mxu0 0.0
        %309 = vmatpush1.msra.mxu0 %v306
        %310 = vmatprep.subr.mxu0 0.0
        %311 = vmatpush1.msra.mxu0 0.0
        %312 = vmatprep.subr.mxu0 0.0
        %313 = vmatpush1.msra.mxu0 0.0
        %314 = vmatprep.subr.mxu0 0.0
        %315 = vmatpush1.msra.mxu0 0.0
        %316 = vmatprep.subr.mxu0 0.0
        %317 = vmatpush1.msra.mxu0 0.0
        %318 = vmatprep.subr.mxu0 0.0
        %319 = vmatpush1.msra.mxu0 0.0
        %320 = vmatprep.subr.mxu0 0.0
        %321 = vmatpush1.msra.mxu0 0.0
        %322 = vmatprep.subr.mxu0 0.0
        %323 = vmatpush1.msra.mxu0 0.0
        %324 = vmatprep.subr.mxu0 0.0
        %325 = vmatpush1.msra.mxu0 0.0
        %326 = vmatprep.subr.mxu0 0.0
        %327 = vmatpush1.msra.mxu0 0.0
        %328 = vmatprep.subr.mxu0 0.0
        %329 = vmatpush1.msra.mxu0 0.0
        %330 = vmatprep.subr.mxu0 0.0
        %331 = vmatpush1.msra.mxu0 0.0
        %332 = vmatprep.subr.mxu0 0.0
        %333 = vmatpush1.msra.mxu0 0.0
        %334 = vmatprep.subr.mxu0 0.0
        %335 = vmatpush1.msra.mxu0 0.0
        %336 = vmatprep.subr.mxu0 0.0
        %337 = vmatpush1.msra.mxu0 0.0
        %338 = vmatprep.subr.mxu0 0.0
        %339 = vmatpush1.msra.mxu0 0.0
        %340 = vmatprep.subr.mxu0 0.0
        %341 = vmatpush1.msra.mxu0 0.0
        %342 = vmatprep.subr.mxu0 0.0
        %343 = vmatpush1.msra.mxu0 0.0
        %344 = vmatprep.subr.mxu0 0.0
        %345 = vmatpush1.msra.mxu0 0.0
        %346 = vmatprep.subr.mxu0 0.0
        %347 = vmatpush1.msra.mxu0 0.0
        %348 = vmatprep.subr.mxu0 0.0
        %349 = vmatpush1.msra.mxu0 0.0
        %350 = vmatprep.subr.mxu0 0.0
        %351 = vmatpush1.msra.mxu0 0.0
        %352 = vmatprep.subr.mxu0 0.0
        %353 = vmatpush1.msra.mxu0 0.0
        %354 = vmatprep.subr.mxu0 0.0
        %355 = vmatpush1.msra.mxu0 0.0
        %356 = vmatprep.subr.mxu0 0.0
        %357 = vmatpush1.msra.mxu0 0.0
        %358 = vmatprep.subr.mxu0 0.0
        %359 = vmatpush1.msra.mxu0 0.0
        %360 = vmatprep.subr.mxu0 0.0
        %361 = vmatpush1.msra.mxu0 0.0
        %362 = vmatprep.subr.mxu0 0.0
        %363 = vmatpush1.msra.mxu0 0.0
        %364 = vmatprep.subr.mxu0 0.0
        %365 = vmatpush1.msra.mxu0 0.0
        %366 = vmatprep.subr.mxu0 0.0
        %367 = vmatpush1.msra.mxu0 0.0
        %368 = vmatprep.subr.mxu0 0.0
        %369 = vmatpush1.msra.mxu0 0.0
        %370 = vmatprep.subr.mxu0 0.0
        %371 = vmatpush1.msra.mxu0 0.0
        %372 = vmatprep.mubr.f32.mxu0 0.0
        %373 = vmatmul.mubr.f32.gmra.mrb[0].mxu0 %v299
        %v374 = vpop.f32.mrb[0].mxu0
        %v375 = vadd.f32 0.0, %v374
        %v376 = vpop.f32.mrb[0].mxu0
        %377 = vmatprep.mubr.f32.mxu0 0.0
        %378 = vmatmul.mubr.f32.gmra.mrb[0].mxu0 %v302
        %v379 = vpop.f32.mrb[0].mxu0
        %v380 = vadd.f32 0.0, %v379
        %v381 = vpop.f32.mrb[0].mxu0
        %382 = vdwg.mxu0
        %v384 = vsel %vm286, %v291, 0
        %v387 = vsel %vm286, %v292, 0
        %v390 = vsel %vm304, %v295, 0
        %392 = vmatprep.subr.mxu0 0.0
        %393 = vmatpush1.msra.mxu0 %v390
        %394 = vmatprep.subr.mxu0 0.0
        %395 = vmatpush1.msra.mxu0 0.0
        %396 = vmatprep.subr.mxu0 0.0
        %397 = vmatpush1.msra.mxu0 0.0
        %398 = vmatprep.subr.mxu0 0.0
        %399 = vmatpush1.msra.mxu0 0.0
        %400 = vmatprep.subr.mxu0 0.0
        %401 = vmatpush1.msra.mxu0 0.0
        %402 = vmatprep.subr.mxu0 0.0
        %403 = vmatpush1.msra.mxu0 0.0
        %404 = vmatprep.subr.mxu0 0.0
        %405 = vmatpush1.msra.mxu0 0.0
        %406 = vmatprep.subr.mxu0 0.0
        %407 = vmatpush1.msra.mxu0 0.0
        %408 = vmatprep.subr.mxu0 0.0
        %409 = vmatpush1.msra.mxu0 0.0
        %410 = vmatprep.subr.mxu0 0.0
        %411 = vmatpush1.msra.mxu0 0.0
        %412 = vmatprep.subr.mxu0 0.0
        %413 = vmatpush1.msra.mxu0 0.0
        %414 = vmatprep.subr.mxu0 0.0
        %415 = vmatpush1.msra.mxu0 0.0
        %416 = vmatprep.subr.mxu0 0.0
        %417 = vmatpush1.msra.mxu0 0.0
        %418 = vmatprep.subr.mxu0 0.0
        %419 = vmatpush1.msra.mxu0 0.0
        %420 = vmatprep.subr.mxu0 0.0
        %421 = vmatpush1.msra.mxu0 0.0
        %422 = vmatprep.subr.mxu0 0.0
        %423 = vmatpush1.msra.mxu0 0.0
        %424 = vmatprep.subr.mxu0 0.0
        %425 = vmatpush1.msra.mxu0 0.0
        %426 = vmatprep.subr.mxu0 0.0
        %427 = vmatpush1.msra.mxu0 0.0
        %428 = vmatprep.subr.mxu0 0.0
        %429 = vmatpush1.msra.mxu0 0.0
        %430 = vmatprep.subr.mxu0 0.0
        %431 = vmatpush1.msra.mxu0 0.0
        %432 = vmatprep.subr.mxu0 0.0
        %433 = vmatpush1.msra.mxu0 0.0
        %434 = vmatprep.subr.mxu0 0.0
        %435 = vmatpush1.msra.mxu0 0.0
        %436 = vmatprep.subr.mxu0 0.0
        %437 = vmatpush1.msra.mxu0 0.0
        %438 = vmatprep.subr.mxu0 0.0
        %439 = vmatpush1.msra.mxu0 0.0
        %440 = vmatprep.subr.mxu0 0.0
        %441 = vmatpush1.msra.mxu0 0.0
        %442 = vmatprep.subr.mxu0 0.0
        %443 = vmatpush1.msra.mxu0 0.0
        %444 = vmatprep.subr.mxu0 0.0
        %445 = vmatpush1.msra.mxu0 0.0
        %446 = vmatprep.subr.mxu0 0.0
        %447 = vmatpush1.msra.mxu0 0.0
        %448 = vmatprep.subr.mxu0 0.0
        %449 = vmatpush1.msra.mxu0 0.0
        %450 = vmatprep.subr.mxu0 0.0
        %451 = vmatpush1.msra.mxu0 0.0
        %452 = vmatprep.subr.mxu0 0.0
        %453 = vmatpush1.msra.mxu0 0.0
        %454 = vmatprep.subr.mxu0 0.0
        %455 = vmatpush1.msra.mxu0 0.0
        %456 = vmatprep.mubr.f32.mxu0 0.0
        %457 = vmatmul.mubr.f32.gmra.mrb[0].mxu0 %v384
        %v458 = vpop.f32.mrb[0].mxu0
        %v459 = vadd.f32 %v375, %v458
        %v460 = vpop.f32.mrb[0].mxu0
        %461 = vmatprep.mubr.f32.mxu0 0.0
        %462 = vmatmul.mubr.f32.gmra.mrb[0].mxu0 %v387
        %v463 = vpop.f32.mrb[0].mxu0
        %v464 = vadd.f32 %v380, %v463
        %v465 = vpop.f32.mrb[0].mxu0
        %466 = vdwg.mxu0
        %v467 = vld [vmem:[%s2] sm:$0x1]
        %v469 = vlaneseq
        %v470 = vshrl.u32 %v469, 7
        %v471 = vsub.s32 0, %v470
        %v472 = vrot.slane %v467, %v471
        %v474 = vadd.f32 %v459, %v472
        %v475 = vadd.f32 %v464, %v472
        %v476 = vtanh.pop %v474
        %v477 = vtanh.pop %v475
        %v478 = vxor.u32 %v474, 2147483648
        %v479 = vxor.u32 %v475, 2147483648
        %v480 = vmul.f32 %v478, 1.442695
        %v481 = vpow.pop %v480
        %v482 = vmul.f32 %v479, 1.442695
        %v483 = vpow.pop %v482
        %v484 = vadd.f32 %v481, 1.0
        %v485 = vadd.f32 %v483, 1.0
        %v486 = vrcp.pop %v484
        %v487 = vmul.f32 1.0, %v486
        %v488 = vrcp.pop %v485
        %v489 = vmul.f32 1.0, %v488
        %492 = vrot.lane.b32.xlu0 %v487, 8
        %v493 = vpop.permute.xlu0 %492
        %494 = vrot.lane.b32.xlu0 %v489, 8
        %v495 = vpop.permute.xlu0 %494
        %v498 = vmul.f32 %v476, %v493
        %v499 = vmul.f32 %v477, %v495
        %502 = vrot.lane.b32.xlu0 %v498, 124
        %v503 = vpop.permute.xlu0 %502
        %504 = vrot.lane.b32.xlu0 %v499, 124
        %v505 = vpop.permute.xlu0 %504
        %vm508 = vcmask 97312
        %509 = vst.msk [vmem:[#allocation2 + $0x8] sm:$0xff] %vm508, %v503
        %510 = vst.msk [vmem:[#allocation2 + $0x10] sm:$0xff] %vm508, %v505
        %511 = vst.msk [vmem:[%s271] sm:$0xff] %vm508, %v503
        %512 = vst.msk [vmem:[%s271 + $0x8] sm:$0xff] %vm508, %v505
        %v513 = vld [vmem:[#allocation2 + $0x6] sm:$0xff]
        %v514 = vld [vmem:[#allocation2 + $0xe] sm:$0xff]
        %v515 = vld [vmem:[#allocation2 + $0xa] sm:$0xff]
        %v516 = vld [vmem:[#allocation2 + $0x12] sm:$0xff]
        %v517 = vld [vmem:[%s3] sm:$0xff]
        %v518 = vld [vmem:[%s3 + $0x8] sm:$0xf]
        %s519 = scalar_lea.vmem %s3, 16
        %v520 = vld [vmem:[%s519] sm:$0xff]
        %v521 = vld [vmem:[%s519 + $0x8] sm:$0xf]
        %vm522 = vcmask 97280
        %v524 = vsel %vm522, %v515, 0
        %v527 = vsel %vm522, %v516, 0
        %v530 = vsel %vm304, %v521, 0
        %532 = vmatprep.subr.mxu0 0.0
        %533 = vmatpush1.msra.mxu0 %v520
        %534 = vmatprep.subr.mxu0 0.0
        %535 = vmatpush1.msra.mxu0 %v530
        %536 = vmatprep.subr.mxu0 0.0
        %537 = vmatpush1.msra.mxu0 0.0
        %538 = vmatprep.subr.mxu0 0.0
        %539 = vmatpush1.msra.mxu0 0.0
        %540 = vmatprep.subr.mxu0 0.0
        %541 = vmatpush1.msra.mxu0 0.0
        %542 = vmatprep.subr.mxu0 0.0
        %543 = vmatpush1.msra.mxu0 0.0
        %544 = vmatprep.subr.mxu0 0.0
        %545 = vmatpush1.msra.mxu0 0.0
        %546 = vmatprep.subr.mxu0 0.0
        %547 = vmatpush1.msra.mxu0 0.0
        %548 = vmatprep.subr.mxu0 0.0
        %549 = vmatpush1.msra.mxu0 0.0
        %550 = vmatprep.subr.mxu0 0.0
        %551 = vmatpush1.msra.mxu0 0.0
        %552 = vmatprep.subr.mxu0 0.0
        %553 = vmatpush1.msra.mxu0 0.0
        %554 = vmatprep.subr.mxu0 0.0
        %555 = vmatpush1.msra.mxu0 0.0
        %556 = vmatprep.subr.mxu0 0.0
        %557 = vmatpush1.msra.mxu0 0.0
        %558 = vmatprep.subr.mxu0 0.0
        %559 = vmatpush1.msra.mxu0 0.0
        %560 = vmatprep.subr.mxu0 0.0
        %561 = vmatpush1.msra.mxu0 0.0
        %562 = vmatprep.subr.mxu0 0.0
        %563 = vmatpush1.msra.mxu0 0.0
        %564 = vmatprep.subr.mxu0 0.0
        %565 = vmatpush1.msra.mxu0 0.0
        %566 = vmatprep.subr.mxu0 0.0
        %567 = vmatpush1.msra.mxu0 0.0
        %568 = vmatprep.subr.mxu0 0.0
        %569 = vmatpush1.msra.mxu0 0.0
        %570 = vmatprep.subr.mxu0 0.0
        %571 = vmatpush1.msra.mxu0 0.0
        %572 = vmatprep.subr.mxu0 0.0
        %573 = vmatpush1.msra.mxu0 0.0
        %574 = vmatprep.subr.mxu0 0.0
        %575 = vmatpush1.msra.mxu0 0.0
        %576 = vmatprep.subr.mxu0 0.0
        %577 = vmatpush1.msra.mxu0 0.0
        %578 = vmatprep.subr.mxu0 0.0
        %579 = vmatpush1.msra.mxu0 0.0
        %580 = vmatprep.subr.mxu0 0.0
        %581 = vmatpush1.msra.mxu0 0.0
        %582 = vmatprep.subr.mxu0 0.0
        %583 = vmatpush1.msra.mxu0 0.0
        %584 = vmatprep.subr.mxu0 0.0
        %585 = vmatpush1.msra.mxu0 0.0
        %586 = vmatprep.subr.mxu0 0.0
        %587 = vmatpush1.msra.mxu0 0.0
        %588 = vmatprep.subr.mxu0 0.0
        %589 = vmatpush1.msra.mxu0 0.0
        %590 = vmatprep.subr.mxu0 0.0
        %591 = vmatpush1.msra.mxu0 0.0
        %592 = vmatprep.subr.mxu0 0.0
        %593 = vmatpush1.msra.mxu0 0.0
        %594 = vmatprep.subr.mxu0 0.0
        %595 = vmatpush1.msra.mxu0 0.0
        %596 = vmatprep.mubr.f32.mxu0 0.0
        %597 = vmatmul.mubr.f32.gmra.mrb[0].mxu0 %v524
        %v598 = vpop.f32.mrb[0].mxu0
        %v599 = vadd.f32 0.0, %v598
        %v600 = vpop.f32.mrb[0].mxu0
        %601 = vmatprep.mubr.f32.mxu0 0.0
        %602 = vmatmul.mubr.f32.gmra.mrb[0].mxu0 %v527
        %v603 = vpop.f32.mrb[0].mxu0
        %v604 = vadd.f32 0.0, %v603
        %v605 = vpop.f32.mrb[0].mxu0
        %606 = vdwg.mxu0
        %v608 = vsel %vm522, %v513, 0
        %v611 = vsel %vm522, %v514, 0
        %v614 = vsel %vm304, %v518, 0
        %616 = vmatprep.subr.mxu0 0.0
        %617 = vmatpush1.msra.mxu0 %v517
        %618 = vmatprep.subr.mxu0 0.0
        %619 = vmatpush1.msra.mxu0 %v614
        %620 = vmatprep.subr.mxu0 0.0
        %621 = vmatpush1.msra.mxu0 0.0
        %622 = vmatprep.subr.mxu0 0.0
        %623 = vmatpush1.msra.mxu0 0.0
        %624 = vmatprep.subr.mxu0 0.0
        %625 = vmatpush1.msra.mxu0 0.0
        %626 = vmatprep.subr.mxu0 0.0
        %627 = vmatpush1.msra.mxu0 0.0
        %628 = vmatprep.subr.mxu0 0.0
        %629 = vmatpush1.msra.mxu0 0.0
        %630 = vmatprep.subr.mxu0 0.0
        %631 = vmatpush1.msra.mxu0 0.0
        %632 = vmatprep.subr.mxu0 0.0
        %633 = vmatpush1.msra.mxu0 0.0
        %634 = vmatprep.subr.mxu0 0.0
        %635 = vmatpush1.msra.mxu0 0.0
        %636 = vmatprep.subr.mxu0 0.0
        %637 = vmatpush1.msra.mxu0 0.0
        %638 = vmatprep.subr.mxu0 0.0
        %639 = vmatpush1.msra.mxu0 0.0
        %640 = vmatprep.subr.mxu0 0.0
        %641 = vmatpush1.msra.mxu0 0.0
        %642 = vmatprep.subr.mxu0 0.0
        %643 = vmatpush1.msra.mxu0 0.0
        %644 = vmatprep.subr.mxu0 0.0
        %645 = vmatpush1.msra.mxu0 0.0
        %646 = vmatprep.subr.mxu0 0.0
        %647 = vmatpush1.msra.mxu0 0.0
        %648 = vmatprep.subr.mxu0 0.0
        %649 = vmatpush1.msra.mxu0 0.0
        %650 = vmatprep.subr.mxu0 0.0
        %651 = vmatpush1.msra.mxu0 0.0
        %652 = vmatprep.subr.mxu0 0.0
        %653 = vmatpush1.msra.mxu0 0.0
        %654 = vmatprep.subr.mxu0 0.0
        %655 = vmatpush1.msra.mxu0 0.0
        %656 = vmatprep.subr.mxu0 0.0
        %657 = vmatpush1.msra.mxu0 0.0
        %658 = vmatprep.subr.mxu0 0.0
        %659 = vmatpush1.msra.mxu0 0.0
        %660 = vmatprep.subr.mxu0 0.0
        %661 = vmatpush1.msra.mxu0 0.0
        %662 = vmatprep.subr.mxu0 0.0
        %663 = vmatpush1.msra.mxu0 0.0
        %664 = vmatprep.subr.mxu0 0.0
        %665 = vmatpush1.msra.mxu0 0.0
        %666 = vmatprep.subr.mxu0 0.0
        %667 = vmatpush1.msra.mxu0 0.0
        %668 = vmatprep.subr.mxu0 0.0
        %669 = vmatpush1.msra.mxu0 0.0
        %670 = vmatprep.subr.mxu0 0.0
        %671 = vmatpush1.msra.mxu0 0.0
        %672 = vmatprep.subr.mxu0 0.0
        %673 = vmatpush1.msra.mxu0 0.0
        %674 = vmatprep.subr.mxu0 0.0
        %675 = vmatpush1.msra.mxu0 0.0
        %676 = vmatprep.subr.mxu0 0.0
        %677 = vmatpush1.msra.mxu0 0.0
        %678 = vmatprep.subr.mxu0 0.0
        %679 = vmatpush1.msra.mxu0 0.0
        %680 = vmatprep.mubr.f32.mxu0 0.0
        %681 = vmatmul.mubr.f32.gmra.mrb[0].mxu0 %v608
        %v682 = vpop.f32.mrb[0].mxu0
        %v683 = vadd.f32 %v599, %v682
        %v684 = vpop.f32.mrb[0].mxu0
        %685 = vmatprep.mubr.f32.mxu0 0.0
        %686 = vmatmul.mubr.f32.gmra.mrb[0].mxu0 %v611
        %v687 = vpop.f32.mrb[0].mxu0
        %v688 = vadd.f32 %v604, %v687
        %v689 = vpop.f32.mrb[0].mxu0
        %690 = vdwg.mxu0
        %v691 = vld [vmem:[%s4] sm:$0x1]
        %v693 = vlaneseq
        %v694 = vshrl.u32 %v693, 7
        %v695 = vsub.s32 0, %v694
        %v696 = vrot.slane %v691, %v695
        %v698 = vadd.f32 %v683, %v696
        %v699 = vadd.f32 %v688, %v696
        %v700 = vtanh.pop %v698
        %v701 = vtanh.pop %v699
        %v702 = vxor.u32 %v698, 2147483648
        %v703 = vxor.u32 %v699, 2147483648
        %v704 = vmul.f32 %v702, 1.442695
        %v705 = vpow.pop %v704
        %v706 = vmul.f32 %v703, 1.442695
        %v707 = vpow.pop %v706
        %v708 = vadd.f32 %v705, 1.0
        %v709 = vadd.f32 %v707, 1.0
        %v710 = vrcp.pop %v708
        %v711 = vmul.f32 1.0, %v710
        %v712 = vrcp.pop %v709
        %v713 = vmul.f32 1.0, %v712
        %716 = vrot.lane.b32.xlu0 %v711, 8
        %v717 = vpop.permute.xlu0 %716
        %718 = vrot.lane.b32.xlu0 %v713, 8
        %v719 = vpop.permute.xlu0 %718
        %v722 = vmul.f32 %v700, %v717
        %v723 = vmul.f32 %v701, %v719
        %726 = vrot.lane.b32.xlu0 %v722, 4
        %v727 = vpop.permute.xlu0 %726
        %728 = vrot.lane.b32.xlu0 %v723, 4
        %v729 = vpop.permute.xlu0 %728
        %vm732 = vcmask 162912
        %733 = vst.msk [vmem:[#allocation2 + $0x8] sm:$0xff] %vm732, %v727
        %734 = vst.msk [vmem:[#allocation2 + $0x10] sm:$0xff] %vm732, %v729
        %735 = vst.msk [vmem:[%s271] sm:$0xff] %vm732, %v727
        %736 = vst.msk [vmem:[%s271 + $0x8] sm:$0xff] %vm732, %v729
        %v737 = vld [vmem:[#allocation2 + $0x4] sm:$0xff]
        %v738 = vld [vmem:[#allocation2 + $0xc] sm:$0xff]
        %v739 = vld [vmem:[#allocation2 + $0x14] sm:$0xff]
        %v740 = vld [vmem:[%s5] sm:$0xff]
        %v741 = vld [vmem:[%s5 + $0x8] sm:$0xff]
        %v742 = vld [vmem:[%s5 + $0x10] sm:$0xf]
        %s743 = scalar_lea.vmem %s5, 24
        %v744 = vld [vmem:[%s743] sm:$0xff]
        %v745 = vld [vmem:[%s743 + $0x8] sm:$0xff]
        %v746 = vld [vmem:[%s743 + $0x10] sm:$0xf]
        %vm747 = vcmask 162816
        %v749 = vsel %vm747, %v738, 0
        %v752 = vsel %vm747, %v739, 0
        %v755 = vsel %vm304, %v746, 0
        %757 = vmatprep.subr.mxu0 0.0
        %758 = vmatpush1.msra.mxu0 %v744
        %759 = vmatprep.subr.mxu0 0.0
        %760 = vmatpush1.msra.mxu0 %v745
        %761 = vmatprep.subr.mxu0 0.0
        %762 = vmatpush1.msra.mxu0 %v755
        %763 = vmatprep.subr.mxu0 0.0
        %764 = vmatpush1.msra.mxu0 0.0
        %765 = vmatprep.subr.mxu0 0.0
        %766 = vmatpush1.msra.mxu0 0.0
        %767 = vmatprep.subr.mxu0 0.0
        %768 = vmatpush1.msra.mxu0 0.0
        %769 = vmatprep.subr.mxu0 0.0
        %770 = vmatpush1.msra.mxu0 0.0
        %771 = vmatprep.subr.mxu0 0.0
        %772 = vmatpush1.msra.mxu0 0.0
        %773 = vmatprep.subr.mxu0 0.0
        %774 = vmatpush1.msra.mxu0 0.0
        %775 = vmatprep.subr.mxu0 0.0
        %776 = vmatpush1.msra.mxu0 0.0
        %777 = vmatprep.subr.mxu0 0.0
        %778 = vmatpush1.msra.mxu0 0.0
        %779 = vmatprep.subr.mxu0 0.0
        %780 = vmatpush1.msra.mxu0 0.0
        %781 = vmatprep.subr.mxu0 0.0
        %782 = vmatpush1.msra.mxu0 0.0
        %783 = vmatprep.subr.mxu0 0.0
        %784 = vmatpush1.msra.mxu0 0.0
        %785 = vmatprep.subr.mxu0 0.0
        %786 = vmatpush1.msra.mxu0 0.0
        %787 = vmatprep.subr.mxu0 0.0
        %788 = vmatpush1.msra.mxu0 0.0
        %789 = vmatprep.subr.mxu0 0.0
        %790 = vmatpush1.msra.mxu0 0.0
        %791 = vmatprep.subr.mxu0 0.0
        %792 = vmatpush1.msra.mxu0 0.0
        %793 = vmatprep.subr.mxu0 0.0
        %794 = vmatpush1.msra.mxu0 0.0
        %795 = vmatprep.subr.mxu0 0.0
        %796 = vmatpush1.msra.mxu0 0.0
        %797 = vmatprep.subr.mxu0 0.0
        %798 = vmatpush1.msra.mxu0 0.0
        %799 = vmatprep.subr.mxu0 0.0
        %800 = vmatpush1.msra.mxu0 0.0
        %801 = vmatprep.subr.mxu0 0.0
        %802 = vmatpush1.msra.mxu0 0.0
        %803 = vmatprep.subr.mxu0 0.0
        %804 = vmatpush1.msra.mxu0 0.0
        %805 = vmatprep.subr.mxu0 0.0
        %806 = vmatpush1.msra.mxu0 0.0
        %807 = vmatprep.subr.mxu0 0.0
        %808 = vmatpush1.msra.mxu0 0.0
        %809 = vmatprep.subr.mxu0 0.0
        %810 = vmatpush1.msra.mxu0 0.0
        %811 = vmatprep.subr.mxu0 0.0
        %812 = vmatpush1.msra.mxu0 0.0
        %813 = vmatprep.subr.mxu0 0.0
        %814 = vmatpush1.msra.mxu0 0.0
        %815 = vmatprep.subr.mxu0 0.0
        %816 = vmatpush1.msra.mxu0 0.0
        %817 = vmatprep.subr.mxu0 0.0
        %818 = vmatpush1.msra.mxu0 0.0
        %819 = vmatprep.subr.mxu0 0.0
        %820 = vmatpush1.msra.mxu0 0.0
        %821 = vmatprep.mubr.f32.mxu0 0.0
        %822 = vmatmul.mubr.f32.gmra.mrb[0].mxu0 %v749
        %v823 = vpop.f32.mrb[0].mxu0
        %v824 = vadd.f32 0.0, %v823
        %v825 = vpop.f32.mrb[0].mxu0
        %826 = vmatprep.mubr.f32.mxu0 0.0
        %827 = vmatmul.mubr.f32.gmra.mrb[0].mxu0 %v752
        %v828 = vpop.f32.mrb[0].mxu0
        %v829 = vadd.f32 0.0, %v828
        %v830 = vpop.f32.mrb[0].mxu0
        %831 = vdwg.mxu0
        %v833 = vsel %vm747, %v737, 0
        %v836 = vsel %vm304, %v742, 0
        %838 = vmatprep.subr.mxu0 0.0
        %839 = vmatpush1.msra.mxu0 %v740
        %840 = vmatprep.subr.mxu0 0.0
        %841 = vmatpush1.msra.mxu0 %v741
        %842 = vmatprep.subr.mxu0 0.0
        %843 = vmatpush1.msra.mxu0 %v836
        %844 = vmatprep.subr.mxu0 0.0
        %845 = vmatpush1.msra.mxu0 0.0
        %846 = vmatprep.subr.mxu0 0.0
        %847 = vmatpush1.msra.mxu0 0.0
        %848 = vmatprep.subr.mxu0 0.0
        %849 = vmatpush1.msra.mxu0 0.0
        %850 = vmatprep.subr.mxu0 0.0
        %851 = vmatpush1.msra.mxu0 0.0
        %852 = vmatprep.subr.mxu0 0.0
        %853 = vmatpush1.msra.mxu0 0.0
        %854 = vmatprep.subr.mxu0 0.0
        %855 = vmatpush1.msra.mxu0 0.0
        %856 = vmatprep.subr.mxu0 0.0
        %857 = vmatpush1.msra.mxu0 0.0
        %858 = vmatprep.subr.mxu0 0.0
        %859 = vmatpush1.msra.mxu0 0.0
        %860 = vmatprep.subr.mxu0 0.0
        %861 = vmatpush1.msra.mxu0 0.0
        %862 = vmatprep.subr.mxu0 0.0
        %863 = vmatpush1.msra.mxu0 0.0
        %864 = vmatprep.subr.mxu0 0.0
        %865 = vmatpush1.msra.mxu0 0.0
        %866 = vmatprep.subr.mxu0 0.0
        %867 = vmatpush1.msra.mxu0 0.0
        %868 = vmatprep.subr.mxu0 0.0
        %869 = vmatpush1.msra.mxu0 0.0
        %870 = vmatprep.subr.mxu0 0.0
        %871 = vmatpush1.msra.mxu0 0.0
        %872 = vmatprep.subr.mxu0 0.0
        %873 = vmatpush1.msra.mxu0 0.0
        %874 = vmatprep.subr.mxu0 0.0
        %875 = vmatpush1.msra.mxu0 0.0
        %876 = vmatprep.subr.mxu0 0.0
        %877 = vmatpush1.msra.mxu0 0.0
        %878 = vmatprep.subr.mxu0 0.0
        %879 = vmatpush1.msra.mxu0 0.0
        %880 = vmatprep.subr.mxu0 0.0
        %881 = vmatpush1.msra.mxu0 0.0
        %882 = vmatprep.subr.mxu0 0.0
        %883 = vmatpush1.msra.mxu0 0.0
        %884 = vmatprep.subr.mxu0 0.0
        %885 = vmatpush1.msra.mxu0 0.0
        %886 = vmatprep.subr.mxu0 0.0
        %887 = vmatpush1.msra.mxu0 0.0
        %888 = vmatprep.subr.mxu0 0.0
        %889 = vmatpush1.msra.mxu0 0.0
        %890 = vmatprep.subr.mxu0 0.0
        %891 = vmatpush1.msra.mxu0 0.0
        %892 = vmatprep.subr.mxu0 0.0
        %893 = vmatpush1.msra.mxu0 0.0
        %894 = vmatprep.subr.mxu0 0.0
        %895 = vmatpush1.msra.mxu0 0.0
        %896 = vmatprep.subr.mxu0 0.0
        %897 = vmatpush1.msra.mxu0 0.0
        %898 = vmatprep.subr.mxu0 0.0
        %899 = vmatpush1.msra.mxu0 0.0
        %900 = vmatprep.subr.mxu0 0.0
        %901 = vmatpush1.msra.mxu0 0.0
        %902 = vmatprep.mubr.f32.mxu0 0.0
        %903 = vmatmul.mubr.f32.gmra.mrb[0].mxu0 %v833
        %v904 = vpop.f32.mrb[0].mxu0
        %v905 = vadd.f32 %v824, %v904
        %v906 = vpop.f32.mrb[0].mxu0
        %907 = vmatprep.mubr.f32.mxu0 0.0
        %908 = vmatmul.mubr.f32.gmra.mrb[0].mxu0 %v749
        %v909 = vpop.f32.mrb[0].mxu0
        %v910 = vadd.f32 %v829, %v909
        %v911 = vpop.f32.mrb[0].mxu0
        %912 = vdwg.mxu0
        %v913 = vld [vmem:[%s6] sm:$0x1]
        %v915 = vlaneseq
        %v916 = vshrl.u32 %v915, 7
        %v917 = vsub.s32 0, %v916
        %v918 = vrot.slane %v913, %v917
        %v920 = vadd.f32 %v905, %v918
        %v921 = vadd.f32 %v910, %v918
        %v922 = vtanh.pop %v920
        %v923 = vtanh.pop %v921
        %v924 = vxor.u32 %v920, 2147483648
        %v925 = vxor.u32 %v921, 2147483648
        %v926 = vmul.f32 %v924, 1.442695
        %v927 = vpow.pop %v926
        %v928 = vmul.f32 %v925, 1.442695
        %v929 = vpow.pop %v928
        %v930 = vadd.f32 %v927, 1.0
        %v931 = vadd.f32 %v929, 1.0
        %v932 = vrcp.pop %v930
        %v933 = vmul.f32 1.0, %v932
        %v934 = vrcp.pop %v931
        %v935 = vmul.f32 1.0, %v934
        %938 = vrot.lane.b32.xlu0 %v933, 8
        %v939 = vpop.permute.xlu0 %938
        %940 = vrot.lane.b32.xlu0 %v935, 8
        %v941 = vpop.permute.xlu0 %940
        %v944 = vmul.f32 %v922, %v939
        %v945 = vmul.f32 %v923, %v941
        %948 = vrot.lane.b32.xlu0 %v944, 12
        %v949 = vpop.permute.xlu0 %948
        %950 = vrot.lane.b32.xlu0 %v945, 12
        %v951 = vpop.permute.xlu0 %950
        %vm954 = vcmask 228512
        %955 = vst.msk [vmem:[%s271] sm:$0xff] %vm954, %v949
        %956 = vst.msk [vmem:[%s271 + $0x8] sm:$0xff] %vm954, %v951
        %s957 = sand.u32 %s181, 1
        %s958 = scalar_lea.sflag [#allocation4], %s957
        %s959 = sand.u32 %s181, 1
        %s960 = smul.addr %s959, 16
        %s961 = scalar_lea.vmem [#allocation3], %s960
        // Predicated region
        $region53: #{tpu_custom_call.1} parent=47 // pred_check
          %p962 = pneg %p191
        $region54: #{tpu_custom_call.1} parent=47 // pred_check_branch
          %964 = sbr.rel (%p962) target = $region56
        $region55: #{tpu_custom_call.1} parent=47 // pred_region
          %s966 = ssub.s32 256, 256
          %967 = vsyncadd %s958, %s966
          %s968 = smul.addr %s21, 2
          %s969 = smul.addr %s968, 128
          %s970 = scalar_lea.hbm %s7, %s969
          %s971 = sshll.u32 %s961, 4
          %s972 = int_to_ptr.vmem [resolvable:$true] %s971
          %977 = dma.vmem_to_hbm [thread:$0]  %s972, 256, %s970, %s958, 128, 128, 8
        $region56: #{tpu_custom_call.1} parent=47 // pred_fallthru
          _
      $region48: #{tpu_custom_call.1} parent=5 // pred_fallthru
        _
      %p978 = scmp.le.s32.totalorder 2, %s16
      // Predicated region
      $region57: #{tpu_custom_call.1} parent=5 // pred_check
        %p979 = pneg %p978
      $region58: #{tpu_custom_call.1} parent=5 // pred_check_branch
        %981 = sbr.rel (%p979) target = $region60
      $region59: #{tpu_custom_call.1} parent=5 // pred_region
        %s982 = ssub.s32 %s16, 2
        // Predicated region
        $region61: #{tpu_custom_call.1} parent=59 // pred_check
          %p983 = pneg %p197
        $region62: #{tpu_custom_call.1} parent=59 // pred_check_branch
          %985 = sbr.rel (%p983) target = $region64
        $region63: #{tpu_custom_call.1} parent=59 // pred_region
          %s986 = sand.u32 %s182, 1
          %s987 = scalar_lea.sflag [#allocation4], %s986
          %s988 = sand.u32 %s182, 1
          %s989 = smul.addr %s988, 16
          %s990 = scalar_lea.vmem [#allocation3], %s989
          %991 = dma.done %s987, 256
        $region64: #{tpu_custom_call.1} parent=59 // pred_fallthru
          _
      $region60: #{tpu_custom_call.1} parent=5 // pred_fallthru
        _
    $region6: #{tpu_custom_call.1} parent=1 // loop_footer
      %s20 = sadd.s32 1, %s16
    $region7: #{tpu_custom_call.1} parent=1 // loop_footer_branch
      %15 = sbr.rel target = $region3
    $region8: #{tpu_custom_call.1} parent=1 // loop_exit
      _
    %992 = vsyncpa [#allocation4], 1
    %s993 = scalar_lea.sflag [#allocation4], 1
    %994 = vsyncpa %s993, 1

// kernel: tpu_custom_call.1
$region0: #{tpu_custom_call.1}
  #allocation0 [shape = 'u32[]', space=smem, size = 0x4, offset = 0x4, fixed_abs, tag = 'smem constant byte address 0x4 - core index']
  #allocation1 [shape = 'u32[144,128]{1,0:T(1,128)}', space=vmem, size = 0x12000, scoped, tag = 'internal scratch']
  #allocation2 [shape = 'f32[32,28]{1,0:T(8,128)}', space=vmem, size = 0x4000, scoped, tag = 'scratch operand']
  %s0 = inlined_call_operand.vmem [shape: f32[2,16,4], index: 0, kind: input, shape index: {}]
  %s1 = inlined_call_operand.vmem [shape: f32[2,4,16], index: 1, kind: input, shape index: {}]
  %s2 = inlined_call_operand.vmem [shape: f32[1,16], index: 2, kind: input, shape index: {}]
  %s3 = inlined_call_operand.vmem [shape: f32[2,12,16], index: 3, kind: input, shape index: {}]
  %s4 = inlined_call_operand.vmem [shape: f32[1,16], index: 4, kind: input, shape index: {}]
  %s5 = inlined_call_operand.vmem [shape: f32[2,20,16], index: 5, kind: input, shape index: {}]
  %s6 = inlined_call_operand.vmem [shape: f32[1,16], index: 6, kind: input, shape index: {}]
  %s7 = inlined_call_operand.hbm [shape: f32[2,16,28], index: 7, kind: output, shape index: {}]
  %s8 = sld [smem:[#allocation0]]
  $region65: #{tpu_custom_call.1} parent=0
    _
  %s10 = ssub.s32 1, %s8
  %s11 = scalar_select 0, %s10, %s8
  $region1: #{tpu_custom_call.1} parent=0
    #allocation3 [shape = 'u8[16384]{0}', space=vmem, size = 0x4000, scoped, tag = 'output window, operand 0']
    #allocation4 [shape = 's32[2]{0}', space=sflag, size = 0x8, scoped, tag = 'scoped memory for tpu_custom_call.1']
    %12 = vsyncpa [#allocation4], 0
    %s13 = scalar_lea.sflag [#allocation4], 1
    %14 = vsyncpa %s13, 0
    loop: start=0, step=1, limit=4
    $region2: #{tpu_custom_call.1} parent=1 // loop_pre_header
      _
    $region3: #{tpu_custom_call.1} parent=1 // loop_header
      %s16 = sphi 0, %s20
      %p17 = scmp.ge.s32.totalorder %s16, 4
      %s26 = sphi 0, %s28
      %s29 = sphi 0, %s26
      %s30 = sphi 0, %s29
      %s46 = sphi 0, %s30
      %s50 = sphi 0, %s50
      %s52 = sphi 0, %s50
      %s53 = sphi 0, %s52
      %s67 = sphi 0, %s53
      %s71 = sphi 0, %s71
      %s73 = sphi 0, %s71
      %s74 = sphi 0, %s73
      %s88 = sphi 0, %s74
      %s92 = sphi 0, %s92
      %s94 = sphi 0, %s92
      %s95 = sphi 0, %s94
      %s109 = sphi 0, %s95
      %s113 = sphi 0, %s113
      %s115 = sphi 0, %s113
      %s116 = sphi 0, %s115
      %s130 = sphi 0, %s116
      %s134 = sphi 0, %s134
      %s136 = sphi 0, %s134
      %s137 = sphi 0, %s136
      %s151 = sphi 0, %s137
      %s155 = sphi 0, %s155
      %s157 = sphi 0, %s155
      %s158 = sphi 0, %s157
      %s172 = sphi 0, %s158
      %s178 = sphi 0, %s180
      %s181 = sphi 0, %s178
      %s182 = sphi 0, %s181
      %s198 = sphi 0, %s182
    $region4: #{tpu_custom_call.1} parent=1 // loop_header_branch
      %19 = sbr.rel (%p17) target = $region8
    $region5: #{tpu_custom_call.1} parent=1 // loop_body
      %s21 = ssub.s32 %s16, 1
      %s22 = ssub.s32 %s16, 2
      %s23 = sadd.s32 %s16, 1
      %s24 = ssub.s32 %s16, %s23
      %p25 = scmp.eq.s32.totalorder %s24, 0
      %s27 = sadd.s32 %s26, 1
      %s28 = scalar_select %p25, %s26, %s27
      %p31 = pneg %p25
      %p32 = scmp.eq.s32.totalorder %s16, 1
      %p33 = por %p31, %p32
      %p34 = scmp.ne.s32.totalorder %s26, %s29
      %p35 = scmp.eq.s32.totalorder %s16, 0
      %p36 = por %p34, %p35
      %p37 = scmp.ne.s32.totalorder %s26, %s29
      %p38 = scmp.eq.s32.totalorder %s21, 1
      %p39 = por %p37, %p38
      %p40 = scmp.ne.s32.totalorder %s29, %s30
      %p41 = scmp.eq.s32.totalorder %s21, 0
      %p42 = por %p40, %p41
      %p43 = scmp.ne.s32.totalorder %s29, %s30
      %p44 = scmp.eq.s32.totalorder %s22, 1
      %p45 = por %p43, %p44
      %p47 = scmp.ne.s32.totalorder %s30, %s46
      %p48 = scmp.eq.s32.totalorder %s22, 0
      %p49 = por %p47, %p48
      %s51 = sadd.s32 %s50, 1
      %p54 = scmp.eq.s32.totalorder %s16, 1
      %p55 = scmp.ne.s32.totalorder %s50, %s52
      %p56 = scmp.eq.s32.totalorder %s16, 0
      %p57 = por %p55, %p56
      %p58 = scmp.ne.s32.totalorder %s50, %s52
      %p59 = scmp.eq.s32.totalorder %s21, 1
      %p60 = por %p58, %p59
      %p61 = scmp.ne.s32.totalorder %s52, %s53
      %p62 = scmp.eq.s32.totalorder %s21, 0
      %p63 = por %p61, %p62
      %p64 = scmp.ne.s32.totalorder %s52, %s53
      %p65 = scmp.eq.s32.totalorder %s22, 1
      %p66 = por %p64, %p65
      %p68 = scmp.ne.s32.totalorder %s53, %s67
      %p69 = scmp.eq.s32.totalorder %s22, 0
      %p70 = por %p68, %p69
      %s72 = sadd.s32 %s71, 1
      %p75 = scmp.eq.s32.totalorder %s16, 1
      %p76 = scmp.ne.s32.totalorder %s71, %s73
      %p77 = scmp.eq.s32.totalorder %s16, 0
      %p78 = por %p76, %p77
      %p79 = scmp.ne.s32.totalorder %s71, %s73
      %p80 = scmp.eq.s32.totalorder %s21, 1
      %p81 = por %p79, %p80
      %p82 = scmp.ne.s32.totalorder %s73, %s74
      %p83 = scmp.eq.s32.totalorder %s21, 0
      %p84 = por %p82, %p83
      %p85 = scmp.ne.s32.totalorder %s73, %s74
      %p86 = scmp.eq.s32.totalorder %s22, 1
      %p87 = por %p85, %p86
      %p89 = scmp.ne.s32.totalorder %s74, %s88
      %p90 = scmp.eq.s32.totalorder %s22, 0
      %p91 = por %p89, %p90
      %s93 = sadd.s32 %s92, 1
      %p96 = scmp.eq.s32.totalorder %s16, 1
      %p97 = scmp.ne.s32.totalorder %s92, %s94
      %p98 = scmp.eq.s32.totalorder %s16, 0
      %p99 = por %p97, %p98
      %p100 = scmp.ne.s32.totalorder %s92, %s94
      %p101 = scmp.eq.s32.totalorder %s21, 1
      %p102 = por %p100, %p101
      %p103 = scmp.ne.s32.totalorder %s94, %s95
      %p104 = scmp.eq.s32.totalorder %s21, 0
      %p105 = por %p103, %p104
      %p106 = scmp.ne.s32.totalorder %s94, %s95
      %p107 = scmp.eq.s32.totalorder %s22, 1
      %p108 = por %p106, %p107
      %p110 = scmp.ne.s32.totalorder %s95, %s109
      %p111 = scmp.eq.s32.totalorder %s22, 0
      %p112 = por %p110, %p111
      %s114 = sadd.s32 %s113, 1
      %p117 = scmp.eq.s32.totalorder %s16, 1
      %p118 = scmp.ne.s32.totalorder %s113, %s115
      %p119 = scmp.eq.s32.totalorder %s16, 0
      %p120 = por %p118, %p119
      %p121 = scmp.ne.s32.totalorder %s113, %s115
      %p122 = scmp.eq.s32.totalorder %s21, 1
      %p123 = por %p121, %p122
      %p124 = scmp.ne.s32.totalorder %s115, %s116
      %p125 = scmp.eq.s32.totalorder %s21, 0
      %p126 = por %p124, %p125
      %p127 = scmp.ne.s32.totalorder %s115, %s116
      %p128 = scmp.eq.s32.totalorder %s22, 1
      %p129 = por %p127, %p128
      %p131 = scmp.ne.s32.totalorder %s116, %s130
      %p132 = scmp.eq.s32.totalorder %s22, 0
      %p133 = por %p131, %p132
      %s135 = sadd.s32 %s134, 1
      %p138 = scmp.eq.s32.totalorder %s16, 1
      %p139 = scmp.ne.s32.totalorder %s134, %s136
      %p140 = scmp.eq.s32.totalorder %s16, 0
      %p141 = por %p139, %p140
      %p142 = scmp.ne.s32.totalorder %s134, %s136
      %p143 = scmp.eq.s32.totalorder %s21, 1
      %p144 = por %p142, %p143
      %p145 = scmp.ne.s32.totalorder %s136, %s137
      %p146 = scmp.eq.s32.totalorder %s21, 0
      %p147 = por %p145, %p146
      %p148 = scmp.ne.s32.totalorder %s136, %s137
      %p149 = scmp.eq.s32.totalorder %s22, 1
      %p150 = por %p148, %p149
      %p152 = scmp.ne.s32.totalorder %s137, %s151
      %p153 = scmp.eq.s32.totalorder %s22, 0
      %p154 = por %p152, %p153
      %s156 = sadd.s32 %s155, 1
      %p159 = scmp.eq.s32.totalorder %s16, 1
      %p160 = scmp.ne.s32.totalorder %s155, %s157
      %p161 = scmp.eq.s32.totalorder %s16, 0
      %p162 = por %p160, %p161
      %p163 = scmp.ne.s32.totalorder %s155, %s157
      %p164 = scmp.eq.s32.totalorder %s21, 1
      %p165 = por %p163, %p164
      %p166 = scmp.ne.s32.totalorder %s157, %s158
      %p167 = scmp.eq.s32.totalorder %s21, 0
      %p168 = por %p166, %p167
      %p169 = scmp.ne.s32.totalorder %s157, %s158
      %p170 = scmp.eq.s32.totalorder %s22, 1
      %p171 = por %p169, %p170
      %p173 = scmp.ne.s32.totalorder %s158, %s172
      %p174 = scmp.eq.s32.totalorder %s22, 0
      %p175 = por %p173, %p174
      %s176 = ssub.s32 %s16, %s23
      %p177 = scmp.eq.s32.totalorder %s176, 0
      %s179 = sadd.s32 %s178, 1
      %s180 = scalar_select %p177, %s178, %s179
      %p183 = pneg %p177
      %p184 = scmp.eq.s32.totalorder %s16, 1
      %p185 = por %p183, %p184
      %p186 = scmp.ne.s32.totalorder %s178, %s181
      %p187 = scmp.eq.s32.totalorder %s16, 0
      %p188 = por %p186, %p187
      %p189 = scmp.ne.s32.totalorder %s178, %s181
      %p190 = scmp.eq.s32.totalorder %s21, 1
      %p191 = por %p189, %p190
      %p192 = scmp.ne.s32.totalorder %s181, %s182
      %p193 = scmp.eq.s32.totalorder %s21, 0
      %p194 = por %p192, %p193
      %p195 = scmp.ne.s32.totalorder %s181, %s182
      %p196 = scmp.eq.s32.totalorder %s22, 1
      %p197 = por %p195, %p196
      %p199 = scmp.ne.s32.totalorder %s182, %s198
      %p200 = scmp.eq.s32.totalorder %s22, 0
      %p201 = por %p199, %p200
      %p202 = scmp.le.s32.totalorder 1, %s16
      %p203 = scmp.lt.s32.totalorder %s16, 3
      %p204 = pnand %p202, %p203
      %p205 = pneg %p204
      // Predicated region
      $region9: #{tpu_custom_call.1} parent=5 // pred_check
        _
      $region10: #{tpu_custom_call.1} parent=5 // pred_check_branch
        %207 = sbr.rel (%p204) target = $region12
      $region11: #{tpu_custom_call.1} parent=5 // pred_region
        %s208 = ssub.s32 %s16, 1
        // Predicated region
        $region13: #{tpu_custom_call.1} parent=11 // pred_check
          %p209 = pneg %p63
        $region14: #{tpu_custom_call.1} parent=11 // pred_check_branch
          %211 = sbr.rel (%p209) target = $region16
        $region15: #{tpu_custom_call.1} parent=11 // pred_region
          _
        $region16: #{tpu_custom_call.1} parent=11 // pred_fallthru
          _
        // Predicated region
        $region17: #{tpu_custom_call.1} parent=11 // pred_check
          %p212 = pneg %p84
        $region18: #{tpu_custom_call.1} parent=11 // pred_check_branch
          %214 = sbr.rel (%p212) target = $region20
        $region19: #{tpu_custom_call.1} parent=11 // pred_region
          _
        $region20: #{tpu_custom_call.1} parent=11 // pred_fallthru
          _
        // Predicated region
        $region21: #{tpu_custom_call.1} parent=11 // pred_check
          %p215 = pneg %p105
        $region22: #{tpu_custom_call.1} parent=11 // pred_check_branch
          %217 = sbr.rel (%p215) target = $region24
        $region23: #{tpu_custom_call.1} parent=11 // pred_region
          _
        $region24: #{tpu_custom_call.1} parent=11 // pred_fallthru
          _
        // Predicated region
        $region25: #{tpu_custom_call.1} parent=11 // pred_check
          %p218 = pneg %p126
        $region26: #{tpu_custom_call.1} parent=11 // pred_check_branch
          %220 = sbr.rel (%p218) target = $region28
        $region27: #{tpu_custom_call.1} parent=11 // pred_region
          _
        $region28: #{tpu_custom_call.1} parent=11 // pred_fallthru
          _
        // Predicated region
        $region29: #{tpu_custom_call.1} parent=11 // pred_check
          %p221 = pneg %p147
        $region30: #{tpu_custom_call.1} parent=11 // pred_check_branch
          %223 = sbr.rel (%p221) target = $region32
        $region31: #{tpu_custom_call.1} parent=11 // pred_region
          _
        $region32: #{tpu_custom_call.1} parent=11 // pred_fallthru
          _
        // Predicated region
        $region33: #{tpu_custom_call.1} parent=11 // pred_check
          %p224 = pneg %p168
        $region34: #{tpu_custom_call.1} parent=11 // pred_check_branch
          %226 = sbr.rel (%p224) target = $region36
        $region35: #{tpu_custom_call.1} parent=11 // pred_region
          _
        $region36: #{tpu_custom_call.1} parent=11 // pred_fallthru
          _
      $region12: #{tpu_custom_call.1} parent=5 // pred_fallthru
        _
      %p227 = scmp.lt.s32.totalorder %s16, 2
      // Predicated region
      $region37: #{tpu_custom_call.1} parent=5 // pred_check
        %p228 = pneg %p227
      $region38: #{tpu_custom_call.1} parent=5 // pred_check_branch
        %230 = sbr.rel (%p228) target = $region40
      $region39: #{tpu_custom_call.1} parent=5 // pred_region
        // Predicated region
        $region41: #{tpu_custom_call.1} parent=39 // pred_check
          %p231 = pneg %p36
        $region42: #{tpu_custom_call.1} parent=39 // pred_check_branch
          %233 = sbr.rel (%p231) target = $region44
        $region43: #{tpu_custom_call.1} parent=39 // pred_region
          %p234 = scmp.lt.s32.totalorder %s16, 1
          %s235 = scalar_select %p234, %s16, 1
          %s236 = smul.addr %s235, 2
          %s237 = smul.addr %s236, 8
          %s238 = scalar_lea.vmem %s0, %s237
        $region44: #{tpu_custom_call.1} parent=39 // pred_fallthru
          _
      $region40: #{tpu_custom_call.1} parent=5 // pred_fallthru
        _
      %p239 = scmp.le.s32.totalorder 1, %s16
      %p240 = scmp.lt.s32.totalorder %s16, 3
      %p241 = pnand %p239, %p240
      %p242 = pneg %p241
      // Predicated region
      $region45: #{tpu_custom_call.1} parent=5 // pred_check
        _
      $region46: #{tpu_custom_call.1} parent=5 // pred_check_branch
        %244 = sbr.rel (%p241) target = $region48
      $region47: #{tpu_custom_call.1} parent=5 // pred_region
        %s245 = ssub.s32 %s16, 1
        %p246 = scmp.lt.s32.totalorder %s21, 1
        %s247 = scalar_select %p246, %s21, 1
        %s248 = smul.addr %s247, 2
        %s249 = smul.addr %s248, 8
        %s250 = scalar_lea.vmem %s0, %s249
        %p251 = pneg %p42
        %p252 = pneg %p39
        %p253 = pneg %p63
        %p254 = pneg %p60
        %p255 = pneg %p84
        %p256 = pneg %p81
        %p257 = pneg %p105
        %p258 = pneg %p102
        %p259 = pneg %p126
        %p260 = pneg %p123
        %p261 = pneg %p147
        %p262 = pneg %p144
        %p263 = pneg %p168
        %p264 = pneg %p165
        %p265 = pneg %p194
        %p266 = pneg %p191
        %s267 = sand.u32 %s181, 1
        %s268 = scalar_lea.sflag [#allocation4], %s267
        %s269 = sand.u32 %s181, 1
        %s270 = smul.addr %s269, 16
        %s271 = scalar_lea.vmem [#allocation3], %s270
        %p272 = scmp.lt.s32.totalorder %s21, 1
        %s273 = scalar_select %p272, %s21, 1
        %s274 = smul.addr %s273, 2
        %s275 = smul.addr %s274, 8
        %s276 = scalar_lea.vmem %s0, %s275
        %p277 = scmp.eq.s32.totalorder %s21, 0
        // Predicated region
        $region49: #{tpu_custom_call.1} parent=47 // pred_check
          %p278 = pneg %p277
        $region50: #{tpu_custom_call.1} parent=47 // pred_check_branch
          %280 = sbr.rel (%p278) target = $region52
        $region51: #{tpu_custom_call.1} parent=47 // pred_region
          %vm281 = vcmask 228352
          %282 = vst.msk [vmem:[#allocation2] sm:$0xff] %vm281, 0.0
          %283 = vst.msk [vmem:[#allocation2 + $0x18] sm:$0xff] %vm281, 0.0
        $region52: #{tpu_custom_call.1} parent=47 // pred_fallthru
          _
        %v284 = vld [vmem:[%s276] sm:$0xff]
        %v285 = vld [vmem:[%s276 + $0x8] sm:$0xff]
        %vm286 = vcmask 31744
        %287 = vst.msk [vmem:[#allocation2 + $0x8] sm:$0xff] %vm286, %v284
        %288 = vst.msk [vmem:[#allocation2 + $0x10] sm:$0xff] %vm286, %v285
        %289 = vst.msk [vmem:[%s271] sm:$0xff] %vm286, %v284
        %290 = vst.msk [vmem:[%s271 + $0x8] sm:$0xff] %vm286, %v285
        %v291 = vld [vmem:[#allocation2 + $0x7] sm:$0xff]
        %v292 = vld [vmem:[#allocation2 + $0xf] sm:$0xff]
        %v293 = vld [vmem:[#allocation2 + $0x9] sm:$0xff]
        %v294 = vld [vmem:[#allocation2 + $0x11] sm:$0xff]
        %v295 = vld [vmem:[%s1] sm:$0xf]
        %s296 = scalar_lea.vmem %s1, 4
        %v297 = vld [vmem:[%s296] sm:$0xf]
        %v299 = vsel %vm286, %v293, 0
        %v302 = vsel %vm286, %v294, 0
        %vm304 = vcmask 1043456
        %v306 = vsel %vm304, %v297, 0
        %308 = vmatprep.subr.mxu0 0.0
        %309 = vmatpush1.msra.mxu0 %v306
        %310 = vmatprep.subr.mxu0 0.0
        %311 = vmatpush1.msra.mxu0 0.0
        %312 = vmatprep.subr.mxu0 0.0
        %313 = vmatpush1.msra.mxu0 0.0
        %314 = vmatprep.subr.mxu0 0.0
        %315 = vmatpush1.msra.mxu0 0.0
        %316 = vmatprep.subr.mxu0 0.0
        %317 = vmatpush1.msra.mxu0 0.0
        %318 = vmatprep.subr.mxu0 0.0
        %319 = vmatpush1.msra.mxu0 0.0
        %320 = vmatprep.subr.mxu0 0.0
        %321 = vmatpush1.msra.mxu0 0.0
        %322 = vmatprep.subr.mxu0 0.0
        %323 = vmatpush1.msra.mxu0 0.0
        %324 = vmatprep.subr.mxu0 0.0
        %325 = vmatpush1.msra.mxu0 0.0
        %326 = vmatprep.subr.mxu0 0.0
        %327 = vmatpush1.msra.mxu0 0.0
        %328 = vmatprep.subr.mxu0 0.0
        %329 = vmatpush1.msra.mxu0 0.0
        %330 = vmatprep.subr.mxu0 0.0
        %331 = vmatpush1.msra.mxu0 0.0
        %332 = vmatprep.subr.mxu0 0.0
        %333 = vmatpush1.msra.mxu0 0.0
        %334 = vmatprep.subr.mxu0 0.0
        %335 = vmatpush1.msra.mxu0 0.0
        %336 = vmatprep.subr.mxu0 0.0
        %337 = vmatpush1.msra.mxu0 0.0
        %338 = vmatprep.subr.mxu0 0.0
        %339 = vmatpush1.msra.mxu0 0.0
        %340 = vmatprep.subr.mxu0 0.0
        %341 = vmatpush1.msra.mxu0 0.0
        %342 = vmatprep.subr.mxu0 0.0
        %343 = vmatpush1.msra.mxu0 0.0
        %344 = vmatprep.subr.mxu0 0.0
        %345 = vmatpush1.msra.mxu0 0.0
        %346 = vmatprep.subr.mxu0 0.0
        %347 = vmatpush1.msra.mxu0 0.0
        %348 = vmatprep.subr.mxu0 0.0
        %349 = vmatpush1.msra.mxu0 0.0
        %350 = vmatprep.subr.mxu0 0.0
        %351 = vmatpush1.msra.mxu0 0.0
        %352 = vmatprep.subr.mxu0 0.0
        %353 = vmatpush1.msra.mxu0 0.0
        %354 = vmatprep.subr.mxu0 0.0
        %355 = vmatpush1.msra.mxu0 0.0
        %356 = vmatprep.subr.mxu0 0.0
        %357 = vmatpush1.msra.mxu0 0.0
        %358 = vmatprep.subr.mxu0 0.0
        %359 = vmatpush1.msra.mxu0 0.0
        %360 = vmatprep.subr.mxu0 0.0
        %361 = vmatpush1.msra.mxu0 0.0
        %362 = vmatprep.subr.mxu0 0.0
        %363 = vmatpush1.msra.mxu0 0.0
        %364 = vmatprep.subr.mxu0 0.0
        %365 = vmatpush1.msra.mxu0 0.0
        %366 = vmatprep.subr.mxu0 0.0
        %367 = vmatpush1.msra.mxu0 0.0
        %368 = vmatprep.subr.mxu0 0.0
        %369 = vmatpush1.msra.mxu0 0.0
        %370 = vmatprep.subr.mxu0 0.0
        %371 = vmatpush1.msra.mxu0 0.0
        %372 = vmatprep.mubr.f32.mxu0 0.0
        %373 = vmatmul.mubr.f32.gmra.mrb[0].mxu0 %v299
        %v374 = vpop.f32.mrb[0].mxu0
        %v375 = vadd.f32 0.0, %v374
        %v376 = vpop.f32.mrb[0].mxu0
        %377 = vmatprep.mubr.f32.mxu0 0.0
        %378 = vmatmul.mubr.f32.gmra.mrb[0].mxu0 %v302
        %v379 = vpop.f32.mrb[0].mxu0
        %v380 = vadd.f32 0.0, %v379
        %v381 = vpop.f32.mrb[0].mxu0
        %382 = vdwg.mxu0
        %v384 = vsel %vm286, %v291, 0
        %v387 = vsel %vm286, %v292, 0
        %v390 = vsel %vm304, %v295, 0
        %392 = vmatprep.subr.mxu0 0.0
        %393 = vmatpush1.msra.mxu0 %v390
        %394 = vmatprep.subr.mxu0 0.0
        %395 = vmatpush1.msra.mxu0 0.0
        %396 = vmatprep.subr.mxu0 0.0
        %397 = vmatpush1.msra.mxu0 0.0
        %398 = vmatprep.subr.mxu0 0.0
        %399 = vmatpush1.msra.mxu0 0.0
        %400 = vmatprep.subr.mxu0 0.0
        %401 = vmatpush1.msra.mxu0 0.0
        %402 = vmatprep.subr.mxu0 0.0
        %403 = vmatpush1.msra.mxu0 0.0
        %404 = vmatprep.subr.mxu0 0.0
        %405 = vmatpush1.msra.mxu0 0.0
        %406 = vmatprep.subr.mxu0 0.0
        %407 = vmatpush1.msra.mxu0 0.0
        %408 = vmatprep.subr.mxu0 0.0
        %409 = vmatpush1.msra.mxu0 0.0
        %410 = vmatprep.subr.mxu0 0.0
        %411 = vmatpush1.msra.mxu0 0.0
        %412 = vmatprep.subr.mxu0 0.0
        %413 = vmatpush1.msra.mxu0 0.0
        %414 = vmatprep.subr.mxu0 0.0
        %415 = vmatpush1.msra.mxu0 0.0
        %416 = vmatprep.subr.mxu0 0.0
        %417 = vmatpush1.msra.mxu0 0.0
        %418 = vmatprep.subr.mxu0 0.0
        %419 = vmatpush1.msra.mxu0 0.0
        %420 = vmatprep.subr.mxu0 0.0
        %421 = vmatpush1.msra.mxu0 0.0
        %422 = vmatprep.subr.mxu0 0.0
        %423 = vmatpush1.msra.mxu0 0.0
        %424 = vmatprep.subr.mxu0 0.0
        %425 = vmatpush1.msra.mxu0 0.0
        %426 = vmatprep.subr.mxu0 0.0
        %427 = vmatpush1.msra.mxu0 0.0
        %428 = vmatprep.subr.mxu0 0.0
        %429 = vmatpush1.msra.mxu0 0.0
        %430 = vmatprep.subr.mxu0 0.0
        %431 = vmatpush1.msra.mxu0 0.0
        %432 = vmatprep.subr.mxu0 0.0
        %433 = vmatpush1.msra.mxu0 0.0
        %434 = vmatprep.subr.mxu0 0.0
        %435 = vmatpush1.msra.mxu0 0.0
        %436 = vmatprep.subr.mxu0 0.0
        %437 = vmatpush1.msra.mxu0 0.0
        %438 = vmatprep.subr.mxu0 0.0
        %439 = vmatpush1.msra.mxu0 0.0
        %440 = vmatprep.subr.mxu0 0.0
        %441 = vmatpush1.msra.mxu0 0.0
        %442 = vmatprep.subr.mxu0 0.0
        %443 = vmatpush1.msra.mxu0 0.0
        %444 = vmatprep.subr.mxu0 0.0
        %445 = vmatpush1.msra.mxu0 0.0
        %446 = vmatprep.subr.mxu0 0.0
        %447 = vmatpush1.msra.mxu0 0.0
        %448 = vmatprep.subr.mxu0 0.0
        %449 = vmatpush1.msra.mxu0 0.0
        %450 = vmatprep.subr.mxu0 0.0
        %451 = vmatpush1.msra.mxu0 0.0
        %452 = vmatprep.subr.mxu0 0.0
        %453 = vmatpush1.msra.mxu0 0.0
        %454 = vmatprep.subr.mxu0 0.0
        %455 = vmatpush1.msra.mxu0 0.0
        %456 = vmatprep.mubr.f32.mxu0 0.0
        %457 = vmatmul.mubr.f32.gmra.mrb[0].mxu0 %v384
        %v458 = vpop.f32.mrb[0].mxu0
        %v459 = vadd.f32 %v375, %v458
        %v460 = vpop.f32.mrb[0].mxu0
        %461 = vmatprep.mubr.f32.mxu0 0.0
        %462 = vmatmul.mubr.f32.gmra.mrb[0].mxu0 %v387
        %v463 = vpop.f32.mrb[0].mxu0
        %v464 = vadd.f32 %v380, %v463
        %v465 = vpop.f32.mrb[0].mxu0
        %466 = vdwg.mxu0
        %v467 = vld [vmem:[%s2] sm:$0x1]
        %v469 = vlaneseq
        %v470 = vshrl.u32 %v469, 7
        %v471 = vsub.s32 0, %v470
        %v472 = vrot.slane %v467, %v471
        %v474 = vadd.f32 %v459, %v472
        %v475 = vadd.f32 %v464, %v472
        %v476 = vtanh.pop %v474
        %v477 = vtanh.pop %v475
        %v478 = vxor.u32 %v474, 2147483648
        %v479 = vxor.u32 %v475, 2147483648
        %v480 = vmul.f32 %v478, 1.442695
        %v481 = vpow.pop %v480
        %v482 = vmul.f32 %v479, 1.442695
        %v483 = vpow.pop %v482
        %v484 = vadd.f32 %v481, 1.0
        %v485 = vadd.f32 %v483, 1.0
        %v486 = vrcp.pop %v484
        %v487 = vmul.f32 1.0, %v486
        %v488 = vrcp.pop %v485
        %v489 = vmul.f32 1.0, %v488
        %492 = vrot.lane.b32.xlu0 %v487, 8
        %v493 = vpop.permute.xlu0 %492
        %494 = vrot.lane.b32.xlu0 %v489, 8
        %v495 = vpop.permute.xlu0 %494
        %v498 = vmul.f32 %v476, %v493
        %v499 = vmul.f32 %v477, %v495
        %502 = vrot.lane.b32.xlu0 %v498, 124
        %v503 = vpop.permute.xlu0 %502
        %504 = vrot.lane.b32.xlu0 %v499, 124
        %v505 = vpop.permute.xlu0 %504
        %vm508 = vcmask 97312
        %509 = vst.msk [vmem:[#allocation2 + $0x8] sm:$0xff] %vm508, %v503
        %510 = vst.msk [vmem:[#allocation2 + $0x10] sm:$0xff] %vm508, %v505
        %511 = vst.msk [vmem:[%s271] sm:$0xff] %vm508, %v503
        %512 = vst.msk [vmem:[%s271 + $0x8] sm:$0xff] %vm508, %v505
        %v513 = vld [vmem:[#allocation2 + $0x6] sm:$0xff]
        %v514 = vld [vmem:[#allocation2 + $0xe] sm:$0xff]
        %v515 = vld [vmem:[#allocation2 + $0xa] sm:$0xff]
        %v516 = vld [vmem:[#allocation2 + $0x12] sm:$0xff]
        %v517 = vld [vmem:[%s3] sm:$0xff]
        %v518 = vld [vmem:[%s3 + $0x8] sm:$0xf]
        %s519 = scalar_lea.vmem %s3, 16
        %v520 = vld [vmem:[%s519] sm:$0xff]
        %v521 = vld [vmem:[%s519 + $0x8] sm:$0xf]
        %vm522 = vcmask 97280
        %v524 = vsel %vm522, %v515, 0
        %v527 = vsel %vm522, %v516, 0
        %v530 = vsel %vm304, %v521, 0
        %532 = vmatprep.subr.mxu0 0.0
        %533 = vmatpush1.msra.mxu0 %v520
        %534 = vmatprep.subr.mxu0 0.0
        %535 = vmatpush1.msra.mxu0 %v530
        %536 = vmatprep.subr.mxu0 0.0
        %537 = vmatpush1.msra.mxu0 0.0
        %538 = vmatprep.subr.mxu0 0.0
        %539 = vmatpush1.msra.mxu0 0.0
        %540 = vmatprep.subr.mxu0 0.0
        %541 = vmatpush1.msra.mxu0 0.0
        %542 = vmatprep.subr.mxu0 0.0
        %543 = vmatpush1.msra.mxu0 0.0
        %544 = vmatprep.subr.mxu0 0.0
        %545 = vmatpush1.msra.mxu0 0.0
        %546 = vmatprep.subr.mxu0 0.0
        %547 = vmatpush1.msra.mxu0 0.0
        %548 = vmatprep.subr.mxu0 0.0
        %549 = vmatpush1.msra.mxu0 0.0
        %550 = vmatprep.subr.mxu0 0.0
        %551 = vmatpush1.msra.mxu0 0.0
        %552 = vmatprep.subr.mxu0 0.0
        %553 = vmatpush1.msra.mxu0 0.0
        %554 = vmatprep.subr.mxu0 0.0
        %555 = vmatpush1.msra.mxu0 0.0
        %556 = vmatprep.subr.mxu0 0.0
        %557 = vmatpush1.msra.mxu0 0.0
        %558 = vmatprep.subr.mxu0 0.0
        %559 = vmatpush1.msra.mxu0 0.0
        %560 = vmatprep.subr.mxu0 0.0
        %561 = vmatpush1.msra.mxu0 0.0
        %562 = vmatprep.subr.mxu0 0.0
        %563 = vmatpush1.msra.mxu0 0.0
        %564 = vmatprep.subr.mxu0 0.0
        %565 = vmatpush1.msra.mxu0 0.0
        %566 = vmatprep.subr.mxu0 0.0
        %567 = vmatpush1.msra.mxu0 0.0
        %568 = vmatprep.subr.mxu0 0.0
        %569 = vmatpush1.msra.mxu0 0.0
        %570 = vmatprep.subr.mxu0 0.0
        %571 = vmatpush1.msra.mxu0 0.0
        %572 = vmatprep.subr.mxu0 0.0
        %573 = vmatpush1.msra.mxu0 0.0
        %574 = vmatprep.subr.mxu0 0.0
        %575 = vmatpush1.msra.mxu0 0.0
        %576 = vmatprep.subr.mxu0 0.0
        %577 = vmatpush1.msra.mxu0 0.0
        %578 = vmatprep.subr.mxu0 0.0
        %579 = vmatpush1.msra.mxu0 0.0
        %580 = vmatprep.subr.mxu0 0.0
        %581 = vmatpush1.msra.mxu0 0.0
        %582 = vmatprep.subr.mxu0 0.0
        %583 = vmatpush1.msra.mxu0 0.0
        %584 = vmatprep.subr.mxu0 0.0
        %585 = vmatpush1.msra.mxu0 0.0
        %586 = vmatprep.subr.mxu0 0.0
        %587 = vmatpush1.msra.mxu0 0.0
        %588 = vmatprep.subr.mxu0 0.0
        %589 = vmatpush1.msra.mxu0 0.0
        %590 = vmatprep.subr.mxu0 0.0
        %591 = vmatpush1.msra.mxu0 0.0
        %592 = vmatprep.subr.mxu0 0.0
        %593 = vmatpush1.msra.mxu0 0.0
        %594 = vmatprep.subr.mxu0 0.0
        %595 = vmatpush1.msra.mxu0 0.0
        %596 = vmatprep.mubr.f32.mxu0 0.0
        %597 = vmatmul.mubr.f32.gmra.mrb[0].mxu0 %v524
        %v598 = vpop.f32.mrb[0].mxu0
        %v599 = vadd.f32 0.0, %v598
        %v600 = vpop.f32.mrb[0].mxu0
        %601 = vmatprep.mubr.f32.mxu0 0.0
        %602 = vmatmul.mubr.f32.gmra.mrb[0].mxu0 %v527
        %v603 = vpop.f32.mrb[0].mxu0
        %v604 = vadd.f32 0.0, %v603
        %v605 = vpop.f32.mrb[0].mxu0
        %606 = vdwg.mxu0
        %v608 = vsel %vm522, %v513, 0
        %v611 = vsel %vm522, %v514, 0
        %v614 = vsel %vm304, %v518, 0
        %616 = vmatprep.subr.mxu0 0.0
        %617 = vmatpush1.msra.mxu0 %v517
        %618 = vmatprep.subr.mxu0 0.0
        %619 = vmatpush1.msra.mxu0 %v614
        %620 = vmatprep.subr.mxu0 0.0
        %621 = vmatpush1.msra.mxu0 0.0
        %622 = vmatprep.subr.mxu0 0.0
        %623 = vmatpush1.msra.mxu0 0.0
        %624 = vmatprep.subr.mxu0 0.0
        %625 = vmatpush1.msra.mxu0 0.0
        %626 = vmatprep.subr.mxu0 0.0
        %627 = vmatpush1.msra.mxu0 0.0
        %628 = vmatprep.subr.mxu0 0.0
        %629 = vmatpush1.msra.mxu0 0.0
        %630 = vmatprep.subr.mxu0 0.0
        %631 = vmatpush1.msra.mxu0 0.0
        %632 = vmatprep.subr.mxu0 0.0
        %633 = vmatpush1.msra.mxu0 0.0
        %634 = vmatprep.subr.mxu0 0.0
        %635 = vmatpush1.msra.mxu0 0.0
        %636 = vmatprep.subr.mxu0 0.0
        %637 = vmatpush1.msra.mxu0 0.0
        %638 = vmatprep.subr.mxu0 0.0
        %639 = vmatpush1.msra.mxu0 0.0
        %640 = vmatprep.subr.mxu0 0.0
        %641 = vmatpush1.msra.mxu0 0.0
        %642 = vmatprep.subr.mxu0 0.0
        %643 = vmatpush1.msra.mxu0 0.0
        %644 = vmatprep.subr.mxu0 0.0
        %645 = vmatpush1.msra.mxu0 0.0
        %646 = vmatprep.subr.mxu0 0.0
        %647 = vmatpush1.msra.mxu0 0.0
        %648 = vmatprep.subr.mxu0 0.0
        %649 = vmatpush1.msra.mxu0 0.0
        %650 = vmatprep.subr.mxu0 0.0
        %651 = vmatpush1.msra.mxu0 0.0
        %652 = vmatprep.subr.mxu0 0.0
        %653 = vmatpush1.msra.mxu0 0.0
        %654 = vmatprep.subr.mxu0 0.0
        %655 = vmatpush1.msra.mxu0 0.0
        %656 = vmatprep.subr.mxu0 0.0
        %657 = vmatpush1.msra.mxu0 0.0
        %658 = vmatprep.subr.mxu0 0.0
        %659 = vmatpush1.msra.mxu0 0.0
        %660 = vmatprep.subr.mxu0 0.0
        %661 = vmatpush1.msra.mxu0 0.0
        %662 = vmatprep.subr.mxu0 0.0
        %663 = vmatpush1.msra.mxu0 0.0
        %664 = vmatprep.subr.mxu0 0.0
        %665 = vmatpush1.msra.mxu0 0.0
        %666 = vmatprep.subr.mxu0 0.0
        %667 = vmatpush1.msra.mxu0 0.0
        %668 = vmatprep.subr.mxu0 0.0
        %669 = vmatpush1.msra.mxu0 0.0
        %670 = vmatprep.subr.mxu0 0.0
        %671 = vmatpush1.msra.mxu0 0.0
        %672 = vmatprep.subr.mxu0 0.0
        %673 = vmatpush1.msra.mxu0 0.0
        %674 = vmatprep.subr.mxu0 0.0
        %675 = vmatpush1.msra.mxu0 0.0
        %676 = vmatprep.subr.mxu0 0.0
        %677 = vmatpush1.msra.mxu0 0.0
        %678 = vmatprep.subr.mxu0 0.0
        %679 = vmatpush1.msra.mxu0 0.0
        %680 = vmatprep.mubr.f32.mxu0 0.0
        %681 = vmatmul.mubr.f32.gmra.mrb[0].mxu0 %v608
        %v682 = vpop.f32.mrb[0].mxu0
        %v683 = vadd.f32 %v599, %v682
        %v684 = vpop.f32.mrb[0].mxu0
        %685 = vmatprep.mubr.f32.mxu0 0.0
        %686 = vmatmul.mubr.f32.gmra.mrb[0].mxu0 %v611
        %v687 = vpop.f32.mrb[0].mxu0
        %v688 = vadd.f32 %v604, %v687
        %v689 = vpop.f32.mrb[0].mxu0
        %690 = vdwg.mxu0
        %v691 = vld [vmem:[%s4] sm:$0x1]
        %v693 = vlaneseq
        %v694 = vshrl.u32 %v693, 7
        %v695 = vsub.s32 0, %v694
        %v696 = vrot.slane %v691, %v695
        %v698 = vadd.f32 %v683, %v696
        %v699 = vadd.f32 %v688, %v696
        %v700 = vtanh.pop %v698
        %v701 = vtanh.pop %v699
        %v702 = vxor.u32 %v698, 2147483648
        %v703 = vxor.u32 %v699, 2147483648
        %v704 = vmul.f32 %v702, 1.442695
        %v705 = vpow.pop %v704
        %v706 = vmul.f32 %v703, 1.442695
        %v707 = vpow.pop %v706
        %v708 = vadd.f32 %v705, 1.0
        %v709 = vadd.f32 %v707, 1.0
        %v710 = vrcp.pop %v708
        %v711 = vmul.f32 1.0, %v710
        %v712 = vrcp.pop %v709
        %v713 = vmul.f32 1.0, %v712
        %716 = vrot.lane.b32.xlu0 %v711, 8
        %v717 = vpop.permute.xlu0 %716
        %718 = vrot.lane.b32.xlu0 %v713, 8
        %v719 = vpop.permute.xlu0 %718
        %v722 = vmul.f32 %v700, %v717
        %v723 = vmul.f32 %v701, %v719
        %726 = vrot.lane.b32.xlu0 %v722, 4
        %v727 = vpop.permute.xlu0 %726
        %728 = vrot.lane.b32.xlu0 %v723, 4
        %v729 = vpop.permute.xlu0 %728
        %vm732 = vcmask 162912
        %733 = vst.msk [vmem:[#allocation2 + $0x8] sm:$0xff] %vm732, %v727
        %734 = vst.msk [vmem:[#allocation2 + $0x10] sm:$0xff] %vm732, %v729
        %735 = vst.msk [vmem:[%s271] sm:$0xff] %vm732, %v727
        %736 = vst.msk [vmem:[%s271 + $0x8] sm:$0xff] %vm732, %v729
        %v737 = vld [vmem:[#allocation2 + $0x4] sm:$0xff]
        %v738 = vld [vmem:[#allocation2 + $0xc] sm:$0xff]
        %v739 = vld [vmem:[#allocation2 + $0x14] sm:$0xff]
        %v740 = vld [vmem:[%s5] sm:$0xff]
        %v741 = vld [vmem:[%s5 + $0x8] sm:$0xff]
        %v742 = vld [vmem:[%s5 + $0x10] sm:$0xf]
        %s743 = scalar_lea.vmem %s5, 24
        %v744 = vld [vmem:[%s743] sm:$0xff]
        %v745 = vld [vmem:[%s743 + $0x8] sm:$0xff]
        %v746 = vld [vmem:[%s743 + $0x10] sm:$0xf]
        %vm747 = vcmask 162816
        %v749 = vsel %vm747, %v738, 0
        %v752 = vsel %vm747, %v739, 0
        %v755 = vsel %vm304, %v746, 0
        %757 = vmatprep.subr.mxu0 0.0
        %758 = vmatpush1.msra.mxu0 %v744
        %759 = vmatprep.subr.mxu0 0.0
        %760 = vmatpush1.msra.mxu0 %v745
        %761 = vmatprep.subr.mxu0 0.0
        %762 = vmatpush1.msra.mxu0 %v755
        %763 = vmatprep.subr.mxu0 0.0
        %764 = vmatpush1.msra.mxu0 0.0
        %765 = vmatprep.subr.mxu0 0.0
        %766 = vmatpush1.msra.mxu0 0.0
        %767 = vmatprep.subr.mxu0 0.0
        %768 = vmatpush1.msra.mxu0 0.0
        %769 = vmatprep.subr.mxu0 0.0
        %770 = vmatpush1.msra.mxu0 0.0
        %771 = vmatprep.subr.mxu0 0.0
        %772 = vmatpush1.msra.mxu0 0.0
        %773 = vmatprep.subr.mxu0 0.0
        %774 = vmatpush1.msra.mxu0 0.0
        %775 = vmatprep.subr.mxu0 0.0
        %776 = vmatpush1.msra.mxu0 0.0
        %777 = vmatprep.subr.mxu0 0.0
        %778 = vmatpush1.msra.mxu0 0.0
        %779 = vmatprep.subr.mxu0 0.0
        %780 = vmatpush1.msra.mxu0 0.0
        %781 = vmatprep.subr.mxu0 0.0
        %782 = vmatpush1.msra.mxu0 0.0
        %783 = vmatprep.subr.mxu0 0.0
        %784 = vmatpush1.msra.mxu0 0.0
        %785 = vmatprep.subr.mxu0 0.0
        %786 = vmatpush1.msra.mxu0 0.0
        %787 = vmatprep.subr.mxu0 0.0
        %788 = vmatpush1.msra.mxu0 0.0
        %789 = vmatprep.subr.mxu0 0.0
        %790 = vmatpush1.msra.mxu0 0.0
        %791 = vmatprep.subr.mxu0 0.0
        %792 = vmatpush1.msra.mxu0 0.0
        %793 = vmatprep.subr.mxu0 0.0
        %794 = vmatpush1.msra.mxu0 0.0
        %795 = vmatprep.subr.mxu0 0.0
        %796 = vmatpush1.msra.mxu0 0.0
        %797 = vmatprep.subr.mxu0 0.0
        %798 = vmatpush1.msra.mxu0 0.0
        %799 = vmatprep.subr.mxu0 0.0
        %800 = vmatpush1.msra.mxu0 0.0
        %801 = vmatprep.subr.mxu0 0.0
        %802 = vmatpush1.msra.mxu0 0.0
        %803 = vmatprep.subr.mxu0 0.0
        %804 = vmatpush1.msra.mxu0 0.0
        %805 = vmatprep.subr.mxu0 0.0
        %806 = vmatpush1.msra.mxu0 0.0
        %807 = vmatprep.subr.mxu0 0.0
        %808 = vmatpush1.msra.mxu0 0.0
        %809 = vmatprep.subr.mxu0 0.0
        %810 = vmatpush1.msra.mxu0 0.0
        %811 = vmatprep.subr.mxu0 0.0
        %812 = vmatpush1.msra.mxu0 0.0
        %813 = vmatprep.subr.mxu0 0.0
        %814 = vmatpush1.msra.mxu0 0.0
        %815 = vmatprep.subr.mxu0 0.0
        %816 = vmatpush1.msra.mxu0 0.0
        %817 = vmatprep.subr.mxu0 0.0
        %818 = vmatpush1.msra.mxu0 0.0
        %819 = vmatprep.subr.mxu0 0.0
        %820 = vmatpush1.msra.mxu0 0.0
        %821 = vmatprep.mubr.f32.mxu0 0.0
        %822 = vmatmul.mubr.f32.gmra.mrb[0].mxu0 %v749
        %v823 = vpop.f32.mrb[0].mxu0
        %v824 = vadd.f32 0.0, %v823
        %v825 = vpop.f32.mrb[0].mxu0
        %826 = vmatprep.mubr.f32.mxu0 0.0
        %827 = vmatmul.mubr.f32.gmra.mrb[0].mxu0 %v752
        %v828 = vpop.f32.mrb[0].mxu0
        %v829 = vadd.f32 0.0, %v828
        %v830 = vpop.f32.mrb[0].mxu0
        %831 = vdwg.mxu0
        %v833 = vsel %vm747, %v737, 0
        %v836 = vsel %vm304, %v742, 0
        %838 = vmatprep.subr.mxu0 0.0
        %839 = vmatpush1.msra.mxu0 %v740
        %840 = vmatprep.subr.mxu0 0.0
        %841 = vmatpush1.msra.mxu0 %v741
        %842 = vmatprep.subr.mxu0 0.0
        %843 = vmatpush1.msra.mxu0 %v836
        %844 = vmatprep.subr.mxu0 0.0
        %845 = vmatpush1.msra.mxu0 0.0
        %846 = vmatprep.subr.mxu0 0.0
        %847 = vmatpush1.msra.mxu0 0.0
        %848 = vmatprep.subr.mxu0 0.0
        %849 = vmatpush1.msra.mxu0 0.0
        %850 = vmatprep.subr.mxu0 0.0
        %851 = vmatpush1.msra.mxu0 0.0
        %852 = vmatprep.subr.mxu0 0.0
        %853 = vmatpush1.msra.mxu0 0.0
        %854 = vmatprep.subr.mxu0 0.0
        %855 = vmatpush1.msra.mxu0 0.0
        %856 = vmatprep.subr.mxu0 0.0
        %857 = vmatpush1.msra.mxu0 0.0
        %858 = vmatprep.subr.mxu0 0.0
        %859 = vmatpush1.msra.mxu0 0.0
        %860 = vmatprep.subr.mxu0 0.0
        %861 = vmatpush1.msra.mxu0 0.0
        %862 = vmatprep.subr.mxu0 0.0
        %863 = vmatpush1.msra.mxu0 0.0
        %864 = vmatprep.subr.mxu0 0.0
        %865 = vmatpush1.msra.mxu0 0.0
        %866 = vmatprep.subr.mxu0 0.0
        %867 = vmatpush1.msra.mxu0 0.0
        %868 = vmatprep.subr.mxu0 0.0
        %869 = vmatpush1.msra.mxu0 0.0
        %870 = vmatprep.subr.mxu0 0.0
        %871 = vmatpush1.msra.mxu0 0.0
        %872 = vmatprep.subr.mxu0 0.0
        %873 = vmatpush1.msra.mxu0 0.0
        %874 = vmatprep.subr.mxu0 0.0
        %875 = vmatpush1.msra.mxu0 0.0
        %876 = vmatprep.subr.mxu0 0.0
        %877 = vmatpush1.msra.mxu0 0.0
        %878 = vmatprep.subr.mxu0 0.0
        %879 = vmatpush1.msra.mxu0 0.0
        %880 = vmatprep.subr.mxu0 0.0
        %881 = vmatpush1.msra.mxu0 0.0
        %882 = vmatprep.subr.mxu0 0.0
        %883 = vmatpush1.msra.mxu0 0.0
        %884 = vmatprep.subr.mxu0 0.0
        %885 = vmatpush1.msra.mxu0 0.0
        %886 = vmatprep.subr.mxu0 0.0
        %887 = vmatpush1.msra.mxu0 0.0
        %888 = vmatprep.subr.mxu0 0.0
        %889 = vmatpush1.msra.mxu0 0.0
        %890 = vmatprep.subr.mxu0 0.0
        %891 = vmatpush1.msra.mxu0 0.0
        %892 = vmatprep.subr.mxu0 0.0
        %893 = vmatpush1.msra.mxu0 0.0
        %894 = vmatprep.subr.mxu0 0.0
        %895 = vmatpush1.msra.mxu0 0.0
        %896 = vmatprep.subr.mxu0 0.0
        %897 = vmatpush1.msra.mxu0 0.0
        %898 = vmatprep.subr.mxu0 0.0
        %899 = vmatpush1.msra.mxu0 0.0
        %900 = vmatprep.subr.mxu0 0.0
        %901 = vmatpush1.msra.mxu0 0.0
        %902 = vmatprep.mubr.f32.mxu0 0.0
        %903 = vmatmul.mubr.f32.gmra.mrb[0].mxu0 %v833
        %v904 = vpop.f32.mrb[0].mxu0
        %v905 = vadd.f32 %v824, %v904
        %v906 = vpop.f32.mrb[0].mxu0
        %907 = vmatprep.mubr.f32.mxu0 0.0
        %908 = vmatmul.mubr.f32.gmra.mrb[0].mxu0 %v749
        %v909 = vpop.f32.mrb[0].mxu0
        %v910 = vadd.f32 %v829, %v909
        %v911 = vpop.f32.mrb[0].mxu0
        %912 = vdwg.mxu0
        %v913 = vld [vmem:[%s6] sm:$0x1]
        %v915 = vlaneseq
        %v916 = vshrl.u32 %v915, 7
        %v917 = vsub.s32 0, %v916
        %v918 = vrot.slane %v913, %v917
        %v920 = vadd.f32 %v905, %v918
        %v921 = vadd.f32 %v910, %v918
        %v922 = vtanh.pop %v920
        %v923 = vtanh.pop %v921
        %v924 = vxor.u32 %v920, 2147483648
        %v925 = vxor.u32 %v921, 2147483648
        %v926 = vmul.f32 %v924, 1.442695
        %v927 = vpow.pop %v926
        %v928 = vmul.f32 %v925, 1.442695
        %v929 = vpow.pop %v928
        %v930 = vadd.f32 %v927, 1.0
        %v931 = vadd.f32 %v929, 1.0
        %v932 = vrcp.pop %v930
        %v933 = vmul.f32 1.0, %v932
        %v934 = vrcp.pop %v931
        %v935 = vmul.f32 1.0, %v934
        %938 = vrot.lane.b32.xlu0 %v933, 8
        %v939 = vpop.permute.xlu0 %938
        %940 = vrot.lane.b32.xlu0 %v935, 8
        %v941 = vpop.permute.xlu0 %940
        %v944 = vmul.f32 %v922, %v939
        %v945 = vmul.f32 %v923, %v941
        %948 = vrot.lane.b32.xlu0 %v944, 12
        %v949 = vpop.permute.xlu0 %948
        %950 = vrot.lane.b32.xlu0 %v945, 12
        %v951 = vpop.permute.xlu0 %950
        %vm954 = vcmask 228512
        %955 = vst.msk [vmem:[%s271] sm:$0xff] %vm954, %v949
        %956 = vst.msk [vmem:[%s271 + $0x8] sm:$0xff] %vm954, %v951
        %s957 = sand.u32 %s181, 1
        %s958 = scalar_lea.sflag [#allocation4], %s957
        %s959 = sand.u32 %s181, 1
        %s960 = smul.addr %s959, 16
        %s961 = scalar_lea.vmem [#allocation3], %s960
        // Predicated region
        $region53: #{tpu_custom_call.1} parent=47 // pred_check
          %p962 = pneg %p191
        $region54: #{tpu_custom_call.1} parent=47 // pred_check_branch
          %964 = sbr.rel (%p962) target = $region56
        $region55: #{tpu_custom_call.1} parent=47 // pred_region
          %s966 = ssub.s32 256, 256
          %967 = vsyncadd %s958, %s966
          %s968 = smul.addr %s21, 2
          %s969 = smul.addr %s968, 128
          %s970 = scalar_lea.hbm %s7, %s969
          %s971 = sshll.u32 %s961, 4
          %s972 = int_to_ptr.vmem [resolvable:$true] %s971
          %977 = dma.vmem_to_hbm [thread:$0]  %s972, 256, %s970, %s958, 128, 128, 8
        $region56: #{tpu_custom_call.1} parent=47 // pred_fallthru
          _
      $region48: #{tpu_custom_call.1} parent=5 // pred_fallthru
        _
      %p978 = scmp.le.s32.totalorder 2, %s16
      // Predicated region
      $region57: #{tpu_custom_call.1} parent=5 // pred_check
        %p979 = pneg %p978
      $region58: #{tpu_custom_call.1} parent=5 // pred_check_branch
        %981 = sbr.rel (%p979) target = $region60
      $region59: #{tpu_custom_call.1} parent=5 // pred_region
        %s982 = ssub.s32 %s16, 2
        // Predicated region
        $region61: #{tpu_custom_call.1} parent=59 // pred_check
          %p983 = pneg %p197
        $region62: #{tpu_custom_call.1} parent=59 // pred_check_branch
          %985 = sbr.rel (%p983) target = $region64
        $region63: #{tpu_custom_call.1} parent=59 // pred_region
          %s986 = sand.u32 %s182, 1
          %s987 = scalar_lea.sflag [#allocation4], %s986
          %s988 = sand.u32 %s182, 1
          %s989 = smul.addr %s988, 16
          %s990 = scalar_lea.vmem [#allocation3], %s989
          %991 = dma.done %s987, 256
        $region64: #{tpu_custom_call.1} parent=59 // pred_fallthru
          _
      $region60: #{tpu_custom_call.1} parent=5 // pred_fallthru
        _
    $region6: #{tpu_custom_call.1} parent=1 // loop_footer
      %s20 = sadd.s32 1, %s16
    $region7: #{tpu_custom_call.1} parent=1 // loop_footer_branch
      %15 = sbr.rel target = $region3
    $region8: #{tpu_custom_call.1} parent=1 // loop_exit
      _
    %992 = vsyncpa [#allocation4], 1
    %s993 = scalar_lea.sflag [#allocation4], 1
    %994 = vsyncpa %s993, 1

</llo_original>
